<compile_context>
chip_gen: v6e
topology: v6e:2x2x1
jax: 0.10.0
libtpu: 0.0.40
codegen_flags: <defaults>
</compile_context>

<pallas_src>
import itertools

import jax
import jax.numpy as jnp
from jax.experimental import pallas as pl
from jax.experimental.pallas import tpu as pltpu


def _round_up(x, m):
    return (x + m - 1) // m * m


# --------------------------------------------------------------------------
# Backbone kernel: (frames, C*H*W) @ (C*H*W, D) with fused bias + ReLU + bf16
# cast in the epilogue (spatial mean is folded into the weight).
# --------------------------------------------------------------------------
def _backbone_kernel(x_ref, w_ref, b_ref, o_ref):
    x = x_ref[...].astype(jnp.bfloat16)          # in-kernel cast; input stays f32 in HBM
    acc = jnp.dot(x, w_ref[...], preferred_element_type=jnp.float32) + b_ref[...]
    o_ref[...] = jnp.maximum(acc, 0.0).astype(o_ref.dtype)   # fused ReLU + bf16


def backbone_forward(frames, w_fold, b, *, max_rows=512):
    """frames: (N, C*H*W) f32 -> (N, D) bf16 features, already ReLU'd."""
    N, CK = frames.shape
    D = w_fold.shape[1]

    pad = (-N) % 8
    if pad:                         # sublane-align N (tiny copy, only if B*T % 8 != 0)
        frames = jnp.pad(frames, ((0, pad), (0, 0)))
    Np = N + pad

    # Largest sublane-aligned frame tile whose double-buffered input stays well
    # inside the scoped VMEM budget (guard for v7x's smaller 64 MiB VMEM).
    row_bytes = CK * frames.dtype.itemsize
    cap = max(8, ((4 * 1024 * 1024) // row_bytes) // 8 * 8)
    tn = min(Np, max_rows, cap)

    out = pl.pallas_call(
        _backbone_kernel,
        out_shape=jax.ShapeDtypeStruct((Np, D), jnp.bfloat16),
        grid=(pl.cdiv(Np, tn),),
        in_specs=[
            pl.BlockSpec((tn, CK), lambda i: (i, 0)),
            pl.BlockSpec((CK, D), lambda i: (0, 0)),
            pl.BlockSpec((1, D), lambda i: (0, 0)),
        ],
        out_specs=pl.BlockSpec((tn, D), lambda i: (i, 0)),
        compiler_params=pltpu.CompilerParams(
            dimension_semantics=("parallel",),
            vmem_limit_bytes=32 * 1024 * 1024),
    )(frames, w_fold, b)
    return out[:N]


# --------------------------------------------------------------------------
# Fused multi-scale relation kernel: one grid step per scale, all sampled
# relations of the scale batched into the M dimension of a single matmul pair.
# --------------------------------------------------------------------------
def _make_relation_kernel(d_frames, max_rel, feat_dim, batch):
    def kernel(rel_ref, nrel_ref, feat_ref, w1_ref, b1_ref, w2_ref, b2_ref,
               o_ref, x_scr):
        s = pl.program_id(0)

        # ---- gather + pack: X[k*B + b, j*D:(j+1)*D] = feat[rel[s,k,j], b, :]
        # (relations -> M rows, frame slots -> K columns).  The staging scratch
        # is f32 so every partial store is a plain unpacked masked store.
        for k in range(max_rel):                              # static unroll
            for j in range(d_frames):                         # static unroll
                t = rel_ref[s, k * d_frames + j]              # SMEM scalar read
                x_scr[k * batch:(k + 1) * batch,
                      j * feat_dim:(j + 1) * feat_dim] = (
                          feat_ref[t].astype(jnp.float32))    # (B, D) gather
        x = x_scr[...].astype(w1_ref.dtype)                   # (max_rel*B, d_frames*D) bf16

        # ---- fc_fusion of this scale: Linear -> ReLU -> Linear.  The leading
        # ReLU of the PyTorch fc_fusion was hoisted into the backbone epilogue;
        # zero-padded W1 rows null the unused frame slots of smaller scales.
        h = jnp.dot(x, w1_ref[...], preferred_element_type=jnp.float32)
        h = jnp.maximum(h + b1_ref[...], 0.0)                 # bias + ReLU in f32
        y = jnp.dot(h.astype(w2_ref.dtype), w2_ref[...],
                    preferred_element_type=jnp.float32) + b2_ref[...]

        # ---- mask padded relations (k >= n_rel[s]) and reduce over relations.
        n_valid = nrel_ref[s]
        acc = jnp.zeros((batch, y.shape[-1]), jnp.float32)
        for k in range(max_rel):                              # static unroll
            keep = jnp.where(k < n_valid, 1.0, 0.0)
            acc = acc + keep * y[k * batch:(k + 1) * batch, :]
        o_ref[...] = acc

    return kernel


def relation_forward(rel_table, n_rel, feat_tbd, w1_all, b1_all, w2_all, b2_all,
                     *, d_frames, max_rel, feat_dim, batch):
    """rel_table: (S, max_rel*d_frames) i32, n_rel: (S,) i32,
    feat_tbd: (T, B, D) bf16 (ReLU'd) -> per-scale partial logits (S, B, NC_pad)."""
    num_scales, K, Hid = w1_all.shape
    NCp = w2_all.shape[2]
    T, B, D = feat_tbd.shape
    return pl.pallas_call(
        _make_relation_kernel(d_frames, max_rel, feat_dim, batch),
        out_shape=jax.ShapeDtypeStruct((num_scales, B, NCp), jnp.float32),
        grid_spec=pltpu.PrefetchScalarGridSpec(
            num_scalar_prefetch=2,
            grid=(num_scales,),
            in_specs=[
                pl.BlockSpec((T, B, D), lambda s, rel, nr: (0, 0, 0)),
                pl.BlockSpec((None, K, Hid), lambda s, rel, nr: (s, 0, 0)),
                pl.BlockSpec((None, 1, Hid), lambda s, rel, nr: (s, 0, 0)),
                pl.BlockSpec((None, Hid, NCp), lambda s, rel, nr: (s, 0, 0)),
                pl.BlockSpec((None, 1, NCp), lambda s, rel, nr: (s, 0, 0)),
            ],
            out_specs=pl.BlockSpec((None, B, NCp), lambda s, rel, nr: (s, 0, 0)),
            scratch_shapes=[pltpu.VMEM((max_rel * batch, d_frames * feat_dim),
                                       jnp.float32)],
        ),
        compiler_params=pltpu.CompilerParams(
            dimension_semantics=("parallel",),
            vmem_limit_bytes=32 * 1024 * 1024),
    )(rel_table, n_rel, feat_tbd, w1_all, b1_all, w2_all, b2_all)


# --------------------------------------------------------------------------
# MultiScaleTRN in JAX (parameters initialized deterministically in-script)
# --------------------------------------------------------------------------
class MultiScaleTRN:
    def __init__(self, img_feature_dim, d_frames, num_segs, k_random, num_class,
                 in_channels, in_spatial, num_bottleneck=128, seed=0):
        self.img_feature_dim = img_feature_dim
        self.d_frames = d_frames
        self.num_segs = num_segs
        self.k_random = k_random
        self.num_class = num_class
        self.num_bottleneck = num_bottleneck

        D = img_feature_dim
        H, W = in_spatial
        HW = H * W
        key = jax.random.PRNGKey(seed)

        # backbone stand-in: spatial global-avg-pool folded into one projection
        # weight, precomputed here once (no per-forward constant materialization).
        # TODO(synk): pretrained resnet50 is not reproducible in-script.
        key, kw = jax.random.split(key)
        bb_w = 0.05 * jax.random.normal(kw, (in_channels, D), jnp.float32)
        self.bb_w_fold = (jnp.repeat(bb_w, HW, axis=0) / HW).astype(jnp.bfloat16)
        self.bb_b = jnp.zeros((1, D), jnp.float32)

        # multi-scale relation sets (scale = number of frames in a relation)
        self.scales = list(range(d_frames, 1, -1))             # [d, d-1, ..., 2]
        relations_scales = [list(itertools.combinations(range(num_segs), s))
                            for s in self.scales]
        # scale 0 uses exactly its first relation; smaller scales use the first
        # min(k_random, |relations|) relations.
        # TODO(synk): original forward uses np.random.choice per call; replaced
        #             by a deterministic first-k selection.
        n_rel = [1] + [min(k_random, len(r)) for r in relations_scales[1:]]
        self.max_rel = max(n_rel)
        self.n_rel = jnp.asarray(n_rel, jnp.int32)

        rows = []
        for si in range(len(self.scales)):
            rels = [list(r) for r in relations_scales[si][:n_rel[si]]]
            rels = [r + [0] * (d_frames - len(r)) for r in rels]     # pad frame slots
            rels += [[0] * d_frames] * (self.max_rel - len(rels))    # pad relations
            rows.append(sum(rels, []))
        self.rel_table = jnp.asarray(rows, jnp.int32)   # (num_scales, max_rel*d_frames)

        # per-scale fc_fusion (ReLU -> Linear -> ReLU -> Linear), stored stacked
        # and zero-padded: W1 padded to K = d_frames*D so every scale shares one
        # aligned contraction depth; bottleneck / class dims padded to 128 lanes.
        Hid = _round_up(num_bottleneck, 128)
        NCp = _round_up(num_class, 128)
        w1s, b1s, w2s, b2s = [], [], [], []
        for s in self.scales:
            key, k1, k2 = jax.random.split(key, 3)
            in_dim = s * D
            w1 = 0.02 * jax.random.normal(k1, (in_dim, num_bottleneck), jnp.float32)
            b1 = jnp.zeros((num_bottleneck,), jnp.float32)
            w2 = 0.02 * jax.random.normal(k2, (num_bottleneck, num_class), jnp.float32)
            b2 = jnp.zeros((num_class,), jnp.float32)
            w1s.append(jnp.pad(w1, ((0, d_frames * D - in_dim),
                                    (0, Hid - num_bottleneck))).astype(jnp.bfloat16))
            b1s.append(jnp.pad(b1, (0, Hid - num_bottleneck)).reshape(1, Hid))
            w2s.append(jnp.pad(w2, ((0, Hid - num_bottleneck),
                                    (0, NCp - num_class))).astype(jnp.bfloat16))
            b2s.append(jnp.pad(b2, (0, NCp - num_class)).reshape(1, NCp))
        self.w1_all = jnp.stack(w1s)        # (num_scales, d_frames*D, Hid) bf16
        self.b1_all = jnp.stack(b1s)        # (num_scales, 1, Hid) f32
        self.w2_all = jnp.stack(w2s)        # (num_scales, Hid, NCp) bf16
        self.b2_all = jnp.stack(b2s)        # (num_scales, 1, NCp) f32

        self._forward = jax.jit(self._forward_impl)

    def _forward_impl(self, x):
        # x: (B, T, C, H, W)
        B, T, C, H, W = x.shape
        D = self.img_feature_dim

        # Backbone on all frames at once (large M tile, fused ReLU + bf16 cast).
        frames = x.reshape(B * T, C * H * W)
        feat = backbone_forward(frames, self.bb_w_fold, self.bb_b)     # (B*T, D) bf16

        # MergeFrame + frame-major layout so the relation kernel gathers a whole
        # (B, D) slab with one dynamic leading-dim index.  This is a ~B*T*D*2-byte
        # layout op, negligible next to the kernels.
        feat_tbd = feat.reshape(B, T, D).transpose(1, 0, 2)            # (T, B, D)

        # Fused multi-scale relation module: one kernel, one grid step per scale
        # ("parallel" so v7x can shard scales across its two TensorCores).
        partial = relation_forward(
            self.rel_table, self.n_rel, feat_tbd,
            self.w1_all, self.b1_all, self.w2_all, self.b2_all,
            d_frames=self.d_frames, max_rel=self.max_rel,
            feat_dim=D, batch=B)                                       # (S, B, NCp)

        # Cross-scale sum of the per-scale partials + strip the lane padding.
        return jnp.sum(partial, axis=0)[:, :self.num_class]

    def __call__(self, x):
        return self._forward(x)


# --------------------------------------------------------------------------
if __name__ == "__main__":
    B, T, C, H, W = 2, 8, 4, 16, 16
    img_feature_dim = 32
    d_frames = 4
    num_segs = T
    k_random = 3
    num_class = 16

    key = jax.random.PRNGKey(0)
    x = jax.random.normal(key, (B, T, C, H, W), jnp.float32)

    model = MultiScaleTRN(img_feature_dim, d_frames, num_segs, k_random,
                          num_class, in_channels=C, in_spatial=(H, W))
    out = jax.block_until_ready(model(x))
    assert out.shape == (B, num_class)
    assert bool(jnp.all(jnp.isfinite(out)))
    print("KERNEL_OK")
</pallas_src>

<mosaic_0001>
module attributes {stable_mosaic.version = 11 : i64} {
  func.func @_backbone_kernel(%arg0: i32, %arg1: memref<16x1024xf32, #tpu.memory_space<vmem>>, %arg2: memref<1024x32xbf16, #tpu.memory_space<vmem>>, %arg3: memref<1x32xf32, #tpu.memory_space<vmem>>, %arg4: memref<16x32xbf16, #tpu.memory_space<vmem>>) attributes {dimension_semantics = [#tpu.dimension_semantics<parallel>], iteration_bounds = array<i64: 1>, scalar_prefetch = 0 : i64, scratch_operands = 0 : i64, tpu.core_type = #tpu.core_type<tc>, window_params = [{transform_indices = @transform_0, window_bounds = array<i64: 16, 1024>}, {pipeline_mode = #tpu.pipeline_mode<synchronous>, transform_indices = @transform_1, window_bounds = array<i64: 1024, 32>}, {pipeline_mode = #tpu.pipeline_mode<synchronous>, transform_indices = @transform_2, window_bounds = array<i64: 1, 32>}, {transform_indices = @transform_3, window_bounds = array<i64: 16, 32>}]} {
    %c0 = arith.constant 0 : index
    %c0_0 = arith.constant 0 : index
    %0 = vector.load %arg1[%c0, %c0_0] : memref<16x1024xf32, #tpu.memory_space<vmem>>, vector<16x1024xf32>
    %1 = arith.truncf %0 : vector<16x1024xf32> to vector<16x1024xbf16>
    %c0_1 = arith.constant 0 : index
    %c0_2 = arith.constant 0 : index
    %2 = vector.load %arg2[%c0_1, %c0_2] : memref<1024x32xbf16, #tpu.memory_space<vmem>>, vector<1024x32xbf16>
    %cst = arith.constant dense<0.000000e+00> : vector<16x32xf32>
    %3 = tpu.matmul %1, %2, %cst {dimension_numbers = #tpu.dot_dimension_numbers<[1], [0], [0], [1], [0, 0, 1, 1], [], []>} : vector<16x1024xbf16>, vector<1024x32xbf16>, vector<16x32xf32> -> vector<16x32xf32>
    %c0_3 = arith.constant 0 : index
    %c0_4 = arith.constant 0 : index
    %4 = vector.load %arg3[%c0_3, %c0_4] : memref<1x32xf32, #tpu.memory_space<vmem>>, vector<1x32xf32>
    %5 = vector.broadcast %4 : vector<1x32xf32> to vector<16x32xf32>
    %6 = arith.addf %3, %5 : vector<16x32xf32>
    %cst_5 = arith.constant 0.000000e+00 : f32
    %7 = vector.broadcast %cst_5 : f32 to vector<16x32xf32>
    %8 = arith.maximumf %6, %7 : vector<16x32xf32>
    %9 = arith.truncf %8 : vector<16x32xf32> to vector<16x32xbf16>
    %c0_6 = arith.constant 0 : index
    %c0_7 = arith.constant 0 : index
    %10 = vector.load %arg4[%c0_6, %c0_7] : memref<16x32xbf16, #tpu.memory_space<vmem>>, vector<16x32xbf16>
    tpu.vector_store %arg4[%c0_6, %c0_7], %9 {strides = array<i32>} : memref<16x32xbf16, #tpu.memory_space<vmem>>, vector<16x32xbf16>,
    return
  }
  func.func @transform_0(%arg0: i32) -> (i32, i32) {
    %c0_i32 = arith.constant 0 : i32
    %c0_i32_0 = arith.constant 0 : i32
    return %arg0, %c0_i32 : i32, i32
  }
  func.func @transform_1(%arg0: i32) -> (i32, i32) {
    %c0_i32 = arith.constant 0 : i32
    %c0_i32_0 = arith.constant 0 : i32
    %c0_i32_1 = arith.constant 0 : i32
    return %c0_i32, %c0_i32_0 : i32, i32
  }
  func.func @transform_2(%arg0: i32) -> (i32, i32) {
    %c0_i32 = arith.constant 0 : i32
    %c0_i32_0 = arith.constant 0 : i32
    %c0_i32_1 = arith.constant 0 : i32
    return %c0_i32, %c0_i32_0 : i32, i32
  }
  func.func @transform_3(%arg0: i32) -> (i32, i32) {
    %c0_i32 = arith.constant 0 : i32
    %c0_i32_0 = arith.constant 0 : i32
    return %arg0, %c0_i32 : i32, i32
  }
}

module attributes {stable_mosaic.version = 11 : i64} {
  func.func @kernel(%arg0: i32, %arg1: memref<3x12xi32, #tpu.memory_space<smem>>, %arg2: memref<3xi32, #tpu.memory_space<smem>>, %arg3: memref<8x2x32xbf16, #tpu.memory_space<vmem>>, %arg4: memref<1x128x128xbf16, #tpu.memory_space<vmem>>, %arg5: memref<1x1x128xf32, #tpu.memory_space<vmem>>, %arg6: memref<1x128x128xbf16, #tpu.memory_space<vmem>>, %arg7: memref<1x1x128xf32, #tpu.memory_space<vmem>>, %arg8: memref<1x2x128xf32, #tpu.memory_space<vmem>>, %arg9: memref<6x128xf32, #tpu.memory_space<vmem>>) attributes {dimension_semantics = [#tpu.dimension_semantics<parallel>], iteration_bounds = array<i64: 3>, scalar_prefetch = 2 : i64, scratch_operands = 1 : i64, tpu.core_type = #tpu.core_type<tc>, window_params = [{pipeline_mode = #tpu.pipeline_mode<synchronous>, transform_indices = @transform_0, window_bounds = array<i64: 8, 2, 32>}, {transform_indices = @transform_1, window_bounds = array<i64: 1, 128, 128>}, {transform_indices = @transform_2, window_bounds = array<i64: 1, 1, 128>}, {transform_indices = @transform_3, window_bounds = array<i64: 1, 128, 128>}, {transform_indices = @transform_4, window_bounds = array<i64: 1, 1, 128>}, {transform_indices = @transform_5, window_bounds = array<i64: 1, 2, 128>}]} {
    %0 = arith.index_cast %arg0 : i32 to index
    %c0 = arith.constant 0 : index
    %1 = memref.load %arg1[%0, %c0] : memref<3x12xi32, #tpu.memory_space<smem>>
    %2 = arith.index_cast %1 : i32 to index
    %c0_0 = arith.constant 0 : index
    %c0_1 = arith.constant 0 : index
    %3 = vector.load %arg3[%2, %c0_0, %c0_1] : memref<8x2x32xbf16, #tpu.memory_space<vmem>>, vector<1x2x32xbf16>
    %4 = vector.shape_cast %3 : vector<1x2x32xbf16> to vector<2x32xbf16>
    %5 = arith.extf %4 : vector<2x32xbf16> to vector<2x32xf32>
    %c0_2 = arith.constant 0 : index
    %c0_3 = arith.constant 0 : index
    %6 = vector.load %arg9[%c0_2, %c0_3] : memref<6x128xf32, #tpu.memory_space<vmem>>, vector<2x32xf32>
    tpu.vector_store %arg9[%c0_2, %c0_3], %5 {strides = array<i32>} : memref<6x128xf32, #tpu.memory_space<vmem>>, vector<2x32xf32>,
    %7 = arith.index_cast %arg0 : i32 to index
    %c1 = arith.constant 1 : index
    %8 = memref.load %arg1[%7, %c1] : memref<3x12xi32, #tpu.memory_space<smem>>
    %9 = arith.index_cast %8 : i32 to index
    %c0_4 = arith.constant 0 : index
    %c0_5 = arith.constant 0 : index
    %10 = vector.load %arg3[%9, %c0_4, %c0_5] : memref<8x2x32xbf16, #tpu.memory_space<vmem>>, vector<1x2x32xbf16>
    %11 = vector.shape_cast %10 : vector<1x2x32xbf16> to vector<2x32xbf16>
    %12 = arith.extf %11 : vector<2x32xbf16> to vector<2x32xf32>
    %c0_6 = arith.constant 0 : index
    %c32 = arith.constant 32 : index
    %13 = vector.load %arg9[%c0_6, %c32] : memref<6x128xf32, #tpu.memory_space<vmem>>, vector<2x32xf32>
    tpu.vector_store %arg9[%c0_6, %c32], %12 {strides = array<i32>} : memref<6x128xf32, #tpu.memory_space<vmem>>, vector<2x32xf32>,
    %14 = arith.index_cast %arg0 : i32 to index
    %c2 = arith.constant 2 : index
    %15 = memref.load %arg1[%14, %c2] : memref<3x12xi32, #tpu.memory_space<smem>>
    %16 = arith.index_cast %15 : i32 to index
    %c0_7 = arith.constant 0 : index
    %c0_8 = arith.constant 0 : index
    %17 = vector.load %arg3[%16, %c0_7, %c0_8] : memref<8x2x32xbf16, #tpu.memory_space<vmem>>, vector<1x2x32xbf16>
    %18 = vector.shape_cast %17 : vector<1x2x32xbf16> to vector<2x32xbf16>
    %19 = arith.extf %18 : vector<2x32xbf16> to vector<2x32xf32>
    %c0_9 = arith.constant 0 : index
    %c64 = arith.constant 64 : index
    %20 = vector.load %arg9[%c0_9, %c64] : memref<6x128xf32, #tpu.memory_space<vmem>>, vector<2x32xf32>
    tpu.vector_store %arg9[%c0_9, %c64], %19 {strides = array<i32>} : memref<6x128xf32, #tpu.memory_space<vmem>>, vector<2x32xf32>,
    %21 = arith.index_cast %arg0 : i32 to index
    %c3 = arith.constant 3 : index
    %22 = memref.load %arg1[%21, %c3] : memref<3x12xi32, #tpu.memory_space<smem>>
    %23 = arith.index_cast %22 : i32 to index
    %c0_10 = arith.constant 0 : index
    %c0_11 = arith.constant 0 : index
    %24 = vector.load %arg3[%23, %c0_10, %c0_11] : memref<8x2x32xbf16, #tpu.memory_space<vmem>>, vector<1x2x32xbf16>
    %25 = vector.shape_cast %24 : vector<1x2x32xbf16> to vector<2x32xbf16>
    %26 = arith.extf %25 : vector<2x32xbf16> to vector<2x32xf32>
    %c0_12 = arith.constant 0 : index
    %c96 = arith.constant 96 : index
    %27 = vector.load %arg9[%c0_12, %c96] : memref<6x128xf32, #tpu.memory_space<vmem>>, vector<2x32xf32>
    tpu.vector_store %arg9[%c0_12, %c96], %26 {strides = array<i32>} : memref<6x128xf32, #tpu.memory_space<vmem>>, vector<2x32xf32>,
    %28 = arith.index_cast %arg0 : i32 to index
    %c4 = arith.constant 4 : index
    %29 = memref.load %arg1[%28, %c4] : memref<3x12xi32, #tpu.memory_space<smem>>
    %30 = arith.index_cast %29 : i32 to index
    %c0_13 = arith.constant 0 : index
    %c0_14 = arith.constant 0 : index
    %31 = vector.load %arg3[%30, %c0_13, %c0_14] : memref<8x2x32xbf16, #tpu.memory_space<vmem>>, vector<1x2x32xbf16>
    %32 = vector.shape_cast %31 : vector<1x2x32xbf16> to vector<2x32xbf16>
    %33 = arith.extf %32 : vector<2x32xbf16> to vector<2x32xf32>
    %c2_15 = arith.constant 2 : index
    %c0_16 = arith.constant 0 : index
    %34 = vector.load %arg9[%c2_15, %c0_16] : memref<6x128xf32, #tpu.memory_space<vmem>>, vector<2x32xf32>
    tpu.vector_store %arg9[%c2_15, %c0_16], %33 {strides = array<i32>} : memref<6x128xf32, #tpu.memory_space<vmem>>, vector<2x32xf32>,
    %35 = arith.index_cast %arg0 : i32 to index
    %c5 = arith.constant 5 : index
    %36 = memref.load %arg1[%35, %c5] : memref<3x12xi32, #tpu.memory_space<smem>>
    %37 = arith.index_cast %36 : i32 to index
    %c0_17 = arith.constant 0 : index
    %c0_18 = arith.constant 0 : index
    %38 = vector.load %arg3[%37, %c0_17, %c0_18] : memref<8x2x32xbf16, #tpu.memory_space<vmem>>, vector<1x2x32xbf16>
    %39 = vector.shape_cast %38 : vector<1x2x32xbf16> to vector<2x32xbf16>
    %40 = arith.extf %39 : vector<2x32xbf16> to vector<2x32xf32>
    %c2_19 = arith.constant 2 : index
    %c32_20 = arith.constant 32 : index
    %41 = vector.load %arg9[%c2_19, %c32_20] : memref<6x128xf32, #tpu.memory_space<vmem>>, vector<2x32xf32>
    tpu.vector_store %arg9[%c2_19, %c32_20], %40 {strides = array<i32>} : memref<6x128xf32, #tpu.memory_space<vmem>>, vector<2x32xf32>,
    %42 = arith.index_cast %arg0 : i32 to index
    %c6 = arith.constant 6 : index
    %43 = memref.load %arg1[%42, %c6] : memref<3x12xi32, #tpu.memory_space<smem>>
    %44 = arith.index_cast %43 : i32 to index
    %c0_21 = arith.constant 0 : index
    %c0_22 = arith.constant 0 : index
    %45 = vector.load %arg3[%44, %c0_21, %c0_22] : memref<8x2x32xbf16, #tpu.memory_space<vmem>>, vector<1x2x32xbf16>
    %46 = vector.shape_cast %45 : vector<1x2x32xbf16> to vector<2x32xbf16>
    %47 = arith.extf %46 : vector<2x32xbf16> to vector<2x32xf32>
    %c2_23 = arith.constant 2 : index
    %c64_24 = arith.constant 64 : index
    %48 = vector.load %arg9[%c2_23, %c64_24] : memref<6x128xf32, #tpu.memory_space<vmem>>, vector<2x32xf32>
    tpu.vector_store %arg9[%c2_23, %c64_24], %47 {strides = array<i32>} : memref<6x128xf32, #tpu.memory_space<vmem>>, vector<2x32xf32>,
    %49 = arith.index_cast %arg0 : i32 to index
    %c7 = arith.constant 7 : index
    %50 = memref.load %arg1[%49, %c7] : memref<3x12xi32, #tpu.memory_space<smem>>
    %51 = arith.index_cast %50 : i32 to index
    %c0_25 = arith.constant 0 : index
    %c0_26 = arith.constant 0 : index
    %52 = vector.load %arg3[%51, %c0_25, %c0_26] : memref<8x2x32xbf16, #tpu.memory_space<vmem>>, vector<1x2x32xbf16>
    %53 = vector.shape_cast %52 : vector<1x2x32xbf16> to vector<2x32xbf16>
    %54 = arith.extf %53 : vector<2x32xbf16> to vector<2x32xf32>
    %c2_27 = arith.constant 2 : index
    %c96_28 = arith.constant 96 : index
    %55 = vector.load %arg9[%c2_27, %c96_28] : memref<6x128xf32, #tpu.memory_space<vmem>>, vector<2x32xf32>
    tpu.vector_store %arg9[%c2_27, %c96_28], %54 {strides = array<i32>} : memref<6x128xf32, #tpu.memory_space<vmem>>, vector<2x32xf32>,
    %56 = arith.index_cast %arg0 : i32 to index
    %c8 = arith.constant 8 : index
    %57 = memref.load %arg1[%56, %c8] : memref<3x12xi32, #tpu.memory_space<smem>>
    %58 = arith.index_cast %57 : i32 to index
    %c0_29 = arith.constant 0 : index
    %c0_30 = arith.constant 0 : index
    %59 = vector.load %arg3[%58, %c0_29, %c0_30] : memref<8x2x32xbf16, #tpu.memory_space<vmem>>, vector<1x2x32xbf16>
    %60 = vector.shape_cast %59 : vector<1x2x32xbf16> to vector<2x32xbf16>
    %61 = arith.extf %60 : vector<2x32xbf16> to vector<2x32xf32>
    %c4_31 = arith.constant 4 : index
    %c0_32 = arith.constant 0 : index
    %62 = vector.load %arg9[%c4_31, %c0_32] : memref<6x128xf32, #tpu.memory_space<vmem>>, vector<2x32xf32>
    tpu.vector_store %arg9[%c4_31, %c0_32], %61 {strides = array<i32>} : memref<6x128xf32, #tpu.memory_space<vmem>>, vector<2x32xf32>,
    %63 = arith.index_cast %arg0 : i32 to index
    %c9 = arith.constant 9 : index
    %64 = memref.load %arg1[%63, %c9] : memref<3x12xi32, #tpu.memory_space<smem>>
    %65 = arith.index_cast %64 : i32 to index
    %c0_33 = arith.constant 0 : index
    %c0_34 = arith.constant 0 : index
    %66 = vector.load %arg3[%65, %c0_33, %c0_34] : memref<8x2x32xbf16, #tpu.memory_space<vmem>>, vector<1x2x32xbf16>
    %67 = vector.shape_cast %66 : vector<1x2x32xbf16> to vector<2x32xbf16>
    %68 = arith.extf %67 : vector<2x32xbf16> to vector<2x32xf32>
    %c4_35 = arith.constant 4 : index
    %c32_36 = arith.constant 32 : index
    %69 = vector.load %arg9[%c4_35, %c32_36] : memref<6x128xf32, #tpu.memory_space<vmem>>, vector<2x32xf32>
    tpu.vector_store %arg9[%c4_35, %c32_36], %68 {strides = array<i32>} : memref<6x128xf32, #tpu.memory_space<vmem>>, vector<2x32xf32>,
    %70 = arith.index_cast %arg0 : i32 to index
    %c10 = arith.constant 10 : index
    %71 = memref.load %arg1[%70, %c10] : memref<3x12xi32, #tpu.memory_space<smem>>
    %72 = arith.index_cast %71 : i32 to index
    %c0_37 = arith.constant 0 : index
    %c0_38 = arith.constant 0 : index
    %73 = vector.load %arg3[%72, %c0_37, %c0_38] : memref<8x2x32xbf16, #tpu.memory_space<vmem>>, vector<1x2x32xbf16>
    %74 = vector.shape_cast %73 : vector<1x2x32xbf16> to vector<2x32xbf16>
    %75 = arith.extf %74 : vector<2x32xbf16> to vector<2x32xf32>
    %c4_39 = arith.constant 4 : index
    %c64_40 = arith.constant 64 : index
    %76 = vector.load %arg9[%c4_39, %c64_40] : memref<6x128xf32, #tpu.memory_space<vmem>>, vector<2x32xf32>
    tpu.vector_store %arg9[%c4_39, %c64_40], %75 {strides = array<i32>} : memref<6x128xf32, #tpu.memory_space<vmem>>, vector<2x32xf32>,
    %77 = arith.index_cast %arg0 : i32 to index
    %c11 = arith.constant 11 : index
    %78 = memref.load %arg1[%77, %c11] : memref<3x12xi32, #tpu.memory_space<smem>>
    %79 = arith.index_cast %78 : i32 to index
    %c0_41 = arith.constant 0 : index
    %c0_42 = arith.constant 0 : index
    %80 = vector.load %arg3[%79, %c0_41, %c0_42] : memref<8x2x32xbf16, #tpu.memory_space<vmem>>, vector<1x2x32xbf16>
    %81 = vector.shape_cast %80 : vector<1x2x32xbf16> to vector<2x32xbf16>
    %82 = arith.extf %81 : vector<2x32xbf16> to vector<2x32xf32>
    %c4_43 = arith.constant 4 : index
    %c96_44 = arith.constant 96 : index
    %83 = vector.load %arg9[%c4_43, %c96_44] : memref<6x128xf32, #tpu.memory_space<vmem>>, vector<2x32xf32>
    tpu.vector_store %arg9[%c4_43, %c96_44], %82 {strides = array<i32>} : memref<6x128xf32, #tpu.memory_space<vmem>>, vector<2x32xf32>,
    %c0_45 = arith.constant 0 : index
    %c0_46 = arith.constant 0 : index
    %84 = vector.load %arg9[%c0_45, %c0_46] : memref<6x128xf32, #tpu.memory_space<vmem>>, vector<6x128xf32>
    %85 = arith.truncf %84 : vector<6x128xf32> to vector<6x128xbf16>
    %c0_47 = arith.constant 0 : index
    %c0_48 = arith.constant 0 : index
    %c0_49 = arith.constant 0 : index
    %86 = vector.load %arg4[%c0_47, %c0_48, %c0_49] : memref<1x128x128xbf16, #tpu.memory_space<vmem>>, vector<1x128x128xbf16>
    %87 = vector.shape_cast %86 : vector<1x128x128xbf16> to vector<128x128xbf16>
    %cst = arith.constant dense<0.000000e+00> : vector<6x128xf32>
    %88 = tpu.matmul %85, %87, %cst {dimension_numbers = #tpu.dot_dimension_numbers<[1], [0], [0], [1], [0, 0, 1, 1], [], []>} : vector<6x128xbf16>, vector<128x128xbf16>, vector<6x128xf32> -> vector<6x128xf32>
    %c0_50 = arith.constant 0 : index
    %c0_51 = arith.constant 0 : index
    %c0_52 = arith.constant 0 : index
    %89 = vector.load %arg5[%c0_50, %c0_51, %c0_52] : memref<1x1x128xf32, #tpu.memory_space<vmem>>, vector<1x1x128xf32>
    %90 = vector.shape_cast %89 : vector<1x1x128xf32> to vector<1x128xf32>
    %91 = vector.broadcast %90 : vector<1x128xf32> to vector<6x128xf32>
    %92 = arith.addf %88, %91 : vector<6x128xf32>
    %cst_53 = arith.constant 0.000000e+00 : f32
    %93 = vector.broadcast %cst_53 : f32 to vector<6x128xf32>
    %94 = arith.maximumf %92, %93 : vector<6x128xf32>
    %95 = arith.truncf %94 : vector<6x128xf32> to vector<6x128xbf16>
    %c0_54 = arith.constant 0 : index
    %c0_55 = arith.constant 0 : index
    %c0_56 = arith.constant 0 : index
    %96 = vector.load %arg6[%c0_54, %c0_55, %c0_56] : memref<1x128x128xbf16, #tpu.memory_space<vmem>>, vector<1x128x128xbf16>
    %97 = vector.shape_cast %96 : vector<1x128x128xbf16> to vector<128x128xbf16>
    %cst_57 = arith.constant dense<0.000000e+00> : vector<6x128xf32>
    %98 = tpu.matmul %95, %97, %cst_57 {dimension_numbers = #tpu.dot_dimension_numbers<[1], [0], [0], [1], [0, 0, 1, 1], [], []>} : vector<6x128xbf16>, vector<128x128xbf16>, vector<6x128xf32> -> vector<6x128xf32>
    %c0_58 = arith.constant 0 : index
    %c0_59 = arith.constant 0 : index
    %c0_60 = arith.constant 0 : index
    %99 = vector.load %arg7[%c0_58, %c0_59, %c0_60] : memref<1x1x128xf32, #tpu.memory_space<vmem>>, vector<1x1x128xf32>
    %100 = vector.shape_cast %99 : vector<1x1x128xf32> to vector<1x128xf32>
    %101 = vector.broadcast %100 : vector<1x128xf32> to vector<6x128xf32>
    %102 = arith.addf %98, %101 : vector<6x128xf32>
    %103 = arith.index_cast %arg0 : i32 to index
    %104 = memref.load %arg2[%103] : memref<3xi32, #tpu.memory_space<smem>>
    %cst_61 = arith.constant 0.000000e+00 : f32
    %105 = vector.broadcast %cst_61 : f32 to vector<2x128xf32>
    %c0_i32 = arith.constant 0 : i32
    %106 = arith.cmpi sgt, %104, %c0_i32 : i32
    %cst_62 = arith.constant 1.000000e+00 : f32
    %cst_63 = arith.constant 0.000000e+00 : f32
    %107 = arith.select %106, %cst_62, %cst_63 : f32
    %108 = vector.extract_strided_slice %102 {offsets = [0, 0], sizes = [2, 128], strides = [1, 1]} : vector<6x128xf32> to vector<2x128xf32>
    %109 = vector.broadcast %107 : f32 to vector<2x128xf32>
    %110 = arith.mulf %109, %108 : vector<2x128xf32>
    %111 = arith.addf %105, %110 : vector<2x128xf32>
    %c1_i32 = arith.constant 1 : i32
    %112 = arith.cmpi sgt, %104, %c1_i32 : i32
    %cst_64 = arith.constant 1.000000e+00 : f32
    %cst_65 = arith.constant 0.000000e+00 : f32
    %113 = arith.select %112, %cst_64, %cst_65 : f32
    %114 = vector.extract_strided_slice %102 {offsets = [2, 0], sizes = [2, 128], strides = [1, 1]} : vector<6x128xf32> to vector<2x128xf32>
    %115 = vector.broadcast %113 : f32 to vector<2x128xf32>
    %116 = arith.mulf %115, %114 : vector<2x128xf32>
    %117 = arith.addf %111, %116 : vector<2x128xf32>
    %c2_i32 = arith.constant 2 : i32
    %118 = arith.cmpi sgt, %104, %c2_i32 : i32
    %cst_66 = arith.constant 1.000000e+00 : f32
    %cst_67 = arith.constant 0.000000e+00 : f32
    %119 = arith.select %118, %cst_66, %cst_67 : f32
    %120 = vector.extract_strided_slice %102 {offsets = [4, 0], sizes = [2, 128], strides = [1, 1]} : vector<6x128xf32> to vector<2x128xf32>
    %121 = vector.broadcast %119 : f32 to vector<2x128xf32>
    %122 = arith.mulf %121, %120 : vector<2x128xf32>
    %123 = arith.addf %117, %122 : vector<2x128xf32>
    %c0_68 = arith.constant 0 : index
    %c0_69 = arith.constant 0 : index
    %c0_70 = arith.constant 0 : index
    %124 = vector.load %arg8[%c0_68, %c0_69, %c0_70] : memref<1x2x128xf32, #tpu.memory_space<vmem>>, vector<1x2x128xf32>
    %125 = vector.shape_cast %124 : vector<1x2x128xf32> to vector<2x128xf32>
    %126 = vector.shape_cast %123 : vector<2x128xf32> to vector<1x2x128xf32>
    tpu.vector_store %arg8[%c0_68, %c0_69, %c0_70], %126 {strides = array<i32>} : memref<1x2x128xf32, #tpu.memory_space<vmem>>, vector<1x2x128xf32>,
    return
  }
  func.func @transform_0(%arg0: i32, %arg1: memref<3x12xi32, #tpu.memory_space<smem>>, %arg2: memref<3xi32, #tpu.memory_space<smem>>) -> (i32, i32, i32) {
    %c0_i32 = arith.constant 0 : i32
    %c0_i32_0 = arith.constant 0 : i32
    %c0_i32_1 = arith.constant 0 : i32
    %c0_i32_2 = arith.constant 0 : i32
    return %c0_i32, %c0_i32_0, %c0_i32_1 : i32, i32, i32
  }
  func.func @transform_1(%arg0: i32, %arg1: memref<3x12xi32, #tpu.memory_space<smem>>, %arg2: memref<3xi32, #tpu.memory_space<smem>>) -> (i32, i32, i32) {
    %c0_i32 = arith.constant 0 : i32
    %c0_i32_0 = arith.constant 0 : i32
    %c0_i32_1 = arith.constant 0 : i32
    return %arg0, %c0_i32, %c0_i32_0 : i32, i32, i32
  }
  func.func @transform_2(%arg0: i32, %arg1: memref<3x12xi32, #tpu.memory_space<smem>>, %arg2: memref<3xi32, #tpu.memory_space<smem>>) -> (i32, i32, i32) {
    %c0_i32 = arith.constant 0 : i32
    %c0_i32_0 = arith.constant 0 : i32
    %c0_i32_1 = arith.constant 0 : i32
    return %arg0, %c0_i32, %c0_i32_0 : i32, i32, i32
  }
  func.func @transform_3(%arg0: i32, %arg1: memref<3x12xi32, #tpu.memory_space<smem>>, %arg2: memref<3xi32, #tpu.memory_space<smem>>) -> (i32, i32, i32) {
    %c0_i32 = arith.constant 0 : i32
    %c0_i32_0 = arith.constant 0 : i32
    %c0_i32_1 = arith.constant 0 : i32
    return %arg0, %c0_i32, %c0_i32_0 : i32, i32, i32
  }
  func.func @transform_4(%arg0: i32, %arg1: memref<3x12xi32, #tpu.memory_space<smem>>, %arg2: memref<3xi32, #tpu.memory_space<smem>>) -> (i32, i32, i32) {
    %c0_i32 = arith.constant 0 : i32
    %c0_i32_0 = arith.constant 0 : i32
    %c0_i32_1 = arith.constant 0 : i32
    return %arg0, %c0_i32, %c0_i32_0 : i32, i32, i32
  }
  func.func @transform_5(%arg0: i32, %arg1: memref<3x12xi32, #tpu.memory_space<smem>>, %arg2: memref<3xi32, #tpu.memory_space<smem>>) -> (i32, i32, i32) {
    %c0_i32 = arith.constant 0 : i32
    %c0_i32_0 = arith.constant 0 : i32
    %c0_i32_1 = arith.constant 0 : i32
    return %arg0, %c0_i32, %c0_i32_0 : i32, i32, i32
  }
}

</mosaic_0001>

<llo_original>
// kernel: _forward_impl.3
$region0: #{_forward_impl.3}
  #allocation0 [shape = 'u32[]', space=smem, size = 0x4, offset = 0x4, fixed_abs, tag = 'smem constant byte address 0x4 - core index']
  #allocation1 [shape = 'u32[144,128]{1,0:T(1,128)}', space=vmem, size = 0x12000, scoped, tag = 'internal scratch']
  #allocation2 [shape = 'f32[6,128]{1,0:T(8,128)}', space=vmem, size = 0x1000, scoped, tag = 'scratch operand']
  #allocation3 [shape = 's32[1]{0}', space=sflag, size = 0x4, scoped, tag = 'scoped memory for _forward_impl.3']
  #allocation4 [shape = 'u8[2048]{0}', space=smem, size = 0x800, scoped, tag = 'prefetched SMEM operand 0']
  #allocation5 [shape = 'u8[512]{0}', space=smem, size = 0x200, scoped, tag = 'prefetched SMEM operand 1']
  %s0 = inlined_call_operand.vmem [shape: s32[3,12], index: 0, kind: input, shape index: {}]
  %s1 = inlined_call_operand.vmem [shape: s32[3], index: 1, kind: input, shape index: {}]
  %s2 = inlined_call_operand.vmem [shape: bf16[8,2,32], index: 2, kind: input, shape index: {}]
  %s3 = inlined_call_operand.vmem [shape: bf16[3,128,128], index: 3, kind: input, shape index: {}]
  %s4 = inlined_call_operand.vmem [shape: f32[3,1,128], index: 4, kind: input, shape index: {}, may-alias: {4,6}]
  %s5 = inlined_call_operand.vmem [shape: bf16[3,128,128], index: 5, kind: input, shape index: {}]
  %s6 = inlined_call_operand.vmem [shape: f32[3,1,128], index: 6, kind: input, shape index: {}, may-alias: {4,6}]
  %s7 = inlined_call_operand.vmem [shape: f32[3,2,128], index: 7, kind: output, shape index: {}]
  %s8 = sld [smem:[#allocation0]]
  $region53: #{_forward_impl.3} parent=0
    _
  %s10 = ssub.s32 1, %s8
  %s11 = scalar_select 0, %s10, %s8
  %s12 = sshll.u32 %s0, 4
  %s13 = int_to_ptr.vmem [resolvable:$true] %s12
  %15 = dma.vmem_to_smem %s13, 64, [#allocation4], [#allocation3]
  %s16 = sshll.u32 %s1, 4
  %s17 = int_to_ptr.vmem [resolvable:$true] %s16
  %19 = dma.vmem_to_smem %s17, 16, [#allocation5], [#allocation3]
  %20 = dma.done [#allocation3], 80
  %21 = sfence
  loop: start=0, step=1, limit=5
  $region2: #{_forward_impl.3} parent=0 // loop_pre_header
    _
  $region3: #{_forward_impl.3} parent=0 // loop_header
    %s23 = sphi 0, %s27
    %p24 = scmp.ge.s32.totalorder %s23, 5
    %s31 = sphi 0, %s31
    %s33 = sphi 0, %s31
    %s34 = sphi 0, %s33
    %s48 = sphi 0, %s34
    %s54 = sphi 0, %s56
    %s57 = sphi 0, %s54
    %s58 = sphi 0, %s57
    %s74 = sphi 0, %s58
    %s80 = sphi 0, %s82
    %s83 = sphi 0, %s80
    %s84 = sphi 0, %s83
    %s100 = sphi 0, %s84
    %s106 = sphi 0, %s108
    %s109 = sphi 0, %s106
    %s110 = sphi 0, %s109
    %s126 = sphi 0, %s110
    %s132 = sphi 0, %s134
    %s135 = sphi 0, %s132
    %s136 = sphi 0, %s135
    %s152 = sphi 0, %s136
    %s158 = sphi 0, %s160
    %s161 = sphi 0, %s158
    %s162 = sphi 0, %s161
    %s178 = sphi 0, %s162
  $region4: #{_forward_impl.3} parent=0 // loop_header_branch
    %26 = sbr.rel (%p24) target = $region8
  $region5: #{_forward_impl.3} parent=0 // loop_body
    %s28 = ssub.s32 %s23, 1
    %s29 = ssub.s32 %s23, 2
    %s30 = sadd.s32 %s23, 1
    %s32 = sadd.s32 %s31, 1
    %p35 = scmp.eq.s32.totalorder %s23, 2
    %p36 = scmp.ne.s32.totalorder %s31, %s33
    %p37 = scmp.eq.s32.totalorder %s23, 0
    %p38 = por %p36, %p37
    %p39 = scmp.ne.s32.totalorder %s31, %s33
    %p40 = scmp.eq.s32.totalorder %s28, 2
    %p41 = por %p39, %p40
    %p42 = scmp.ne.s32.totalorder %s33, %s34
    %p43 = scmp.eq.s32.totalorder %s28, 0
    %p44 = por %p42, %p43
    %p45 = scmp.ne.s32.totalorder %s33, %s34
    %p46 = scmp.eq.s32.totalorder %s29, 2
    %p47 = por %p45, %p46
    %p49 = scmp.ne.s32.totalorder %s34, %s48
    %p50 = scmp.eq.s32.totalorder %s29, 0
    %p51 = por %p49, %p50
    %s52 = ssub.s32 %s23, %s30
    %p53 = scmp.eq.s32.totalorder %s52, 0
    %s55 = sadd.s32 %s54, 1
    %s56 = scalar_select %p53, %s54, %s55
    %p59 = pneg %p53
    %p60 = scmp.eq.s32.totalorder %s23, 2
    %p61 = por %p59, %p60
    %p62 = scmp.ne.s32.totalorder %s54, %s57
    %p63 = scmp.eq.s32.totalorder %s23, 0
    %p64 = por %p62, %p63
    %p65 = scmp.ne.s32.totalorder %s54, %s57
    %p66 = scmp.eq.s32.totalorder %s28, 2
    %p67 = por %p65, %p66
    %p68 = scmp.ne.s32.totalorder %s57, %s58
    %p69 = scmp.eq.s32.totalorder %s28, 0
    %p70 = por %p68, %p69
    %p71 = scmp.ne.s32.totalorder %s57, %s58
    %p72 = scmp.eq.s32.totalorder %s29, 2
    %p73 = por %p71, %p72
    %p75 = scmp.ne.s32.totalorder %s58, %s74
    %p76 = scmp.eq.s32.totalorder %s29, 0
    %p77 = por %p75, %p76
    %s78 = ssub.s32 %s23, %s30
    %p79 = scmp.eq.s32.totalorder %s78, 0
    %s81 = sadd.s32 %s80, 1
    %s82 = scalar_select %p79, %s80, %s81
    %p85 = pneg %p79
    %p86 = scmp.eq.s32.totalorder %s23, 2
    %p87 = por %p85, %p86
    %p88 = scmp.ne.s32.totalorder %s80, %s83
    %p89 = scmp.eq.s32.totalorder %s23, 0
    %p90 = por %p88, %p89
    %p91 = scmp.ne.s32.totalorder %s80, %s83
    %p92 = scmp.eq.s32.totalorder %s28, 2
    %p93 = por %p91, %p92
    %p94 = scmp.ne.s32.totalorder %s83, %s84
    %p95 = scmp.eq.s32.totalorder %s28, 0
    %p96 = por %p94, %p95
    %p97 = scmp.ne.s32.totalorder %s83, %s84
    %p98 = scmp.eq.s32.totalorder %s29, 2
    %p99 = por %p97, %p98
    %p101 = scmp.ne.s32.totalorder %s84, %s100
    %p102 = scmp.eq.s32.totalorder %s29, 0
    %p103 = por %p101, %p102
    %s104 = ssub.s32 %s23, %s30
    %p105 = scmp.eq.s32.totalorder %s104, 0
    %s107 = sadd.s32 %s106, 1
    %s108 = scalar_select %p105, %s106, %s107
    %p111 = pneg %p105
    %p112 = scmp.eq.s32.totalorder %s23, 2
    %p113 = por %p111, %p112
    %p114 = scmp.ne.s32.totalorder %s106, %s109
    %p115 = scmp.eq.s32.totalorder %s23, 0
    %p116 = por %p114, %p115
    %p117 = scmp.ne.s32.totalorder %s106, %s109
    %p118 = scmp.eq.s32.totalorder %s28, 2
    %p119 = por %p117, %p118
    %p120 = scmp.ne.s32.totalorder %s109, %s110
    %p121 = scmp.eq.s32.totalorder %s28, 0
    %p122 = por %p120, %p121
    %p123 = scmp.ne.s32.totalorder %s109, %s110
    %p124 = scmp.eq.s32.totalorder %s29, 2
    %p125 = por %p123, %p124
    %p127 = scmp.ne.s32.totalorder %s110, %s126
    %p128 = scmp.eq.s32.totalorder %s29, 0
    %p129 = por %p127, %p128
    %s130 = ssub.s32 %s23, %s30
    %p131 = scmp.eq.s32.totalorder %s130, 0
    %s133 = sadd.s32 %s132, 1
    %s134 = scalar_select %p131, %s132, %s133
    %p137 = pneg %p131
    %p138 = scmp.eq.s32.totalorder %s23, 2
    %p139 = por %p137, %p138
    %p140 = scmp.ne.s32.totalorder %s132, %s135
    %p141 = scmp.eq.s32.totalorder %s23, 0
    %p142 = por %p140, %p141
    %p143 = scmp.ne.s32.totalorder %s132, %s135
    %p144 = scmp.eq.s32.totalorder %s28, 2
    %p145 = por %p143, %p144
    %p146 = scmp.ne.s32.totalorder %s135, %s136
    %p147 = scmp.eq.s32.totalorder %s28, 0
    %p148 = por %p146, %p147
    %p149 = scmp.ne.s32.totalorder %s135, %s136
    %p150 = scmp.eq.s32.totalorder %s29, 2
    %p151 = por %p149, %p150
    %p153 = scmp.ne.s32.totalorder %s136, %s152
    %p154 = scmp.eq.s32.totalorder %s29, 0
    %p155 = por %p153, %p154
    %s156 = ssub.s32 %s23, %s30
    %p157 = scmp.eq.s32.totalorder %s156, 0
    %s159 = sadd.s32 %s158, 1
    %s160 = scalar_select %p157, %s158, %s159
    %p163 = pneg %p157
    %p164 = scmp.eq.s32.totalorder %s23, 2
    %p165 = por %p163, %p164
    %p166 = scmp.ne.s32.totalorder %s158, %s161
    %p167 = scmp.eq.s32.totalorder %s23, 0
    %p168 = por %p166, %p167
    %p169 = scmp.ne.s32.totalorder %s158, %s161
    %p170 = scmp.eq.s32.totalorder %s28, 2
    %p171 = por %p169, %p170
    %p172 = scmp.ne.s32.totalorder %s161, %s162
    %p173 = scmp.eq.s32.totalorder %s28, 0
    %p174 = por %p172, %p173
    %p175 = scmp.ne.s32.totalorder %s161, %s162
    %p176 = scmp.eq.s32.totalorder %s29, 2
    %p177 = por %p175, %p176
    %p179 = scmp.ne.s32.totalorder %s162, %s178
    %p180 = scmp.eq.s32.totalorder %s29, 0
    %p181 = por %p179, %p180
    %p182 = scmp.le.s32.totalorder 1, %s23
    %p183 = scmp.lt.s32.totalorder %s23, 4
    %p184 = pnand %p182, %p183
    %p185 = pneg %p184
    // Predicated region
    $region9: #{_forward_impl.3} parent=5 // pred_check
      _
    $region10: #{_forward_impl.3} parent=5 // pred_check_branch
      %187 = sbr.rel (%p184) target = $region12
    $region11: #{_forward_impl.3} parent=5 // pred_region
      %s188 = ssub.s32 %s23, 1
      // Predicated region
      $region13: #{_forward_impl.3} parent=11 // pred_check
        %p189 = pneg %p44
      $region14: #{_forward_impl.3} parent=11 // pred_check_branch
        %191 = sbr.rel (%p189) target = $region16
      $region15: #{_forward_impl.3} parent=11 // pred_region
        _
      $region16: #{_forward_impl.3} parent=11 // pred_fallthru
        _
    $region12: #{_forward_impl.3} parent=5 // pred_fallthru
      _
    %p192 = scmp.lt.s32.totalorder %s23, 3
    // Predicated region
    $region17: #{_forward_impl.3} parent=5 // pred_check
      %p193 = pneg %p192
    $region18: #{_forward_impl.3} parent=5 // pred_check_branch
      %195 = sbr.rel (%p193) target = $region20
    $region19: #{_forward_impl.3} parent=5 // pred_region
      // Predicated region
      $region21: #{_forward_impl.3} parent=19 // pred_check
        %p196 = pneg %p64
      $region22: #{_forward_impl.3} parent=19 // pred_check_branch
        %198 = sbr.rel (%p196) target = $region24
      $region23: #{_forward_impl.3} parent=19 // pred_region
        %p199 = scmp.lt.s32.totalorder %s23, 2
        %s200 = scalar_select %p199, %s23, 2
        %s201 = smul.addr %s200, 16
        %s202 = smul.addr %s201, 4
        %s203 = scalar_lea.vmem %s3, %s202
      $region24: #{_forward_impl.3} parent=19 // pred_fallthru
        _
      // Predicated region
      $region25: #{_forward_impl.3} parent=19 // pred_check
        %p204 = pneg %p90
      $region26: #{_forward_impl.3} parent=19 // pred_check_branch
        %206 = sbr.rel (%p204) target = $region28
      $region27: #{_forward_impl.3} parent=19 // pred_region
        %p207 = scmp.lt.s32.totalorder %s23, 2
        %s208 = scalar_select %p207, %s23, 2
        %s209 = scalar_lea.vmem %s4, %s208
      $region28: #{_forward_impl.3} parent=19 // pred_fallthru
        _
      // Predicated region
      $region29: #{_forward_impl.3} parent=19 // pred_check
        %p210 = pneg %p116
      $region30: #{_forward_impl.3} parent=19 // pred_check_branch
        %212 = sbr.rel (%p210) target = $region32
      $region31: #{_forward_impl.3} parent=19 // pred_region
        %p213 = scmp.lt.s32.totalorder %s23, 2
        %s214 = scalar_select %p213, %s23, 2
        %s215 = smul.addr %s214, 16
        %s216 = smul.addr %s215, 4
        %s217 = scalar_lea.vmem %s5, %s216
      $region32: #{_forward_impl.3} parent=19 // pred_fallthru
        _
      // Predicated region
      $region33: #{_forward_impl.3} parent=19 // pred_check
        %p218 = pneg %p142
      $region34: #{_forward_impl.3} parent=19 // pred_check_branch
        %220 = sbr.rel (%p218) target = $region36
      $region35: #{_forward_impl.3} parent=19 // pred_region
        %p221 = scmp.lt.s32.totalorder %s23, 2
        %s222 = scalar_select %p221, %s23, 2
        %s223 = scalar_lea.vmem %s6, %s222
      $region36: #{_forward_impl.3} parent=19 // pred_fallthru
        _
    $region20: #{_forward_impl.3} parent=5 // pred_fallthru
      _
    %p224 = scmp.le.s32.totalorder 1, %s23
    %p225 = scmp.lt.s32.totalorder %s23, 4
    %p226 = pnand %p224, %p225
    %p227 = pneg %p226
    // Predicated region
    $region37: #{_forward_impl.3} parent=5 // pred_check
      _
    $region38: #{_forward_impl.3} parent=5 // pred_check_branch
      %229 = sbr.rel (%p226) target = $region40
    $region39: #{_forward_impl.3} parent=5 // pred_region
      %s230 = ssub.s32 %s23, 1
      %p231 = pneg %p44
      %p232 = pneg %p41
      %p233 = scmp.lt.s32.totalorder %s28, 2
      %s234 = scalar_select %p233, %s28, 2
      %s235 = smul.addr %s234, 16
      %s236 = smul.addr %s235, 4
      %s237 = scalar_lea.vmem %s3, %s236
      %p238 = pneg %p70
      %p239 = pneg %p67
      %p240 = scmp.lt.s32.totalorder %s28, 2
      %s241 = scalar_select %p240, %s28, 2
      %s242 = scalar_lea.vmem %s4, %s241
      %p243 = pneg %p96
      %p244 = pneg %p93
      %p245 = scmp.lt.s32.totalorder %s28, 2
      %s246 = scalar_select %p245, %s28, 2
      %s247 = smul.addr %s246, 16
      %s248 = smul.addr %s247, 4
      %s249 = scalar_lea.vmem %s5, %s248
      %p250 = pneg %p122
      %p251 = pneg %p119
      %p252 = scmp.lt.s32.totalorder %s28, 2
      %s253 = scalar_select %p252, %s28, 2
      %s254 = scalar_lea.vmem %s6, %s253
      %p255 = pneg %p148
      %p256 = pneg %p145
      %p257 = pneg %p174
      %p258 = pneg %p171
      %p259 = scmp.lt.s32.totalorder %s28, 2
      %s260 = scalar_select %p259, %s28, 2
      %s261 = smul.addr %s260, 2
      %s262 = scalar_lea.vmem %s7, %s261
      %p263 = scmp.lt.s32.totalorder %s28, 2
      %s264 = scalar_select %p263, %s28, 2
      %s265 = smul.addr %s264, 16
      %s266 = smul.addr %s265, 4
      %s267 = scalar_lea.vmem %s3, %s266
      %p268 = scmp.lt.s32.totalorder %s28, 2
      %s269 = scalar_select %p268, %s28, 2
      %s270 = scalar_lea.vmem %s4, %s269
      %p271 = scmp.lt.s32.totalorder %s28, 2
      %s272 = scalar_select %p271, %s28, 2
      %s273 = smul.addr %s272, 16
      %s274 = smul.addr %s273, 4
      %s275 = scalar_lea.vmem %s5, %s274
      %p276 = scmp.lt.s32.totalorder %s28, 2
      %s277 = scalar_select %p276, %s28, 2
      %s278 = scalar_lea.vmem %s6, %s277
      %p279 = scmp.lt.s32.totalorder %s28, 2
      %s280 = scalar_select %p279, %s28, 2
      %s281 = smul.addr %s280, 2
      %s282 = scalar_lea.vmem %s7, %s281
      %s284 = smul.u32 %s28, 128
      %s285 = sld [smem:[#allocation4 + %s284]]
      %s286 = scalar_lea.vmem %s2, %s285
      %v287 = vld [vmem:[%s286] sm:$0x1]
      %v288 = vunpack.c.l.bf16 %v287
      %vm289 = vcmask 254976
      %290 = vst.msk [vmem:[#allocation2] sm:$0x3] %vm289, %v288
      %s291 = sadd.s32 %s284, 1
      %s292 = sld [smem:[#allocation4 + %s291]]
      %s293 = scalar_lea.vmem %s2, %s292
      %v294 = vld [vmem:[%s293] sm:$0x1]
      %v295 = vunpack.c.l.bf16 %v294
      %v298 = vunpack.c.l.s4 1983009808
      %v299 = vunpack.c.0.s8 %v298
      %v300 = vlaneseq
      %v301 = vshrl.u32 %v300, 7
      %v302 = vsub.s32 %v299, %v301
      %v303 = vrot.slane %v295, %v302
      %304 = vrot.lane.b32.xlu0 %v303, 32
      %v305 = vpop.permute.xlu0 %304
      %vm307 = vcmask 517376
      %308 = vst.msk [vmem:[#allocation2] sm:$0x3] %vm307, %v305
      %s309 = sadd.s32 %s284, 2
      %s310 = sld [smem:[#allocation4 + %s309]]
      %s311 = scalar_lea.vmem %s2, %s310
      %v312 = vld [vmem:[%s311] sm:$0x1]
      %v313 = vunpack.c.l.bf16 %v312
      %v316 = vunpack.c.l.s4 1983009808
      %v317 = vunpack.c.0.s8 %v316
      %v318 = vlaneseq
      %v319 = vshrl.u32 %v318, 7
      %v320 = vsub.s32 %v317, %v319
      %v321 = vrot.slane %v313, %v320
      %322 = vrot.lane.b32.xlu0 %v321, 64
      %v323 = vpop.permute.xlu0 %322
      %vm325 = vcmask 779776
      %326 = vst.msk [vmem:[#allocation2] sm:$0x3] %vm325, %v323
      %s327 = sadd.s32 %s284, 3
      %s328 = sld [smem:[#allocation4 + %s327]]
      %s329 = scalar_lea.vmem %s2, %s328
      %v330 = vld [vmem:[%s329] sm:$0x1]
      %v331 = vunpack.c.l.bf16 %v330
      %v334 = vunpack.c.l.s4 1983009808
      %v335 = vunpack.c.0.s8 %v334
      %v336 = vlaneseq
      %v337 = vshrl.u32 %v336, 7
      %v338 = vsub.s32 %v335, %v337
      %v339 = vrot.slane %v331, %v338
      %340 = vrot.lane.b32.xlu0 %v339, 96
      %v341 = vpop.permute.xlu0 %340
      %vm343 = vcmask 1042176
      %344 = vst.msk [vmem:[#allocation2] sm:$0x3] %vm343, %v341
      %s345 = sadd.s32 %s284, 4
      %s346 = sld [smem:[#allocation4 + %s345]]
      %s347 = scalar_lea.vmem %s2, %s346
      %v348 = vld [vmem:[%s347] sm:$0x1]
      %v349 = vunpack.c.l.bf16 %v348
      %350 = vst.msk [vmem:[#allocation2 + $0x2] sm:$0x3] %vm289, %v349
      %s351 = sadd.s32 %s284, 5
      %s352 = sld [smem:[#allocation4 + %s351]]
      %s353 = scalar_lea.vmem %s2, %s352
      %v354 = vld [vmem:[%s353] sm:$0x1]
      %v355 = vunpack.c.l.bf16 %v354
      %v358 = vunpack.c.l.s4 1983009808
      %v359 = vunpack.c.0.s8 %v358
      %v360 = vlaneseq
      %v361 = vshrl.u32 %v360, 7
      %v362 = vsub.s32 %v359, %v361
      %v363 = vrot.slane %v355, %v362
      %364 = vrot.lane.b32.xlu0 %v363, 32
      %v365 = vpop.permute.xlu0 %364
      %367 = vst.msk [vmem:[#allocation2 + $0x2] sm:$0x3] %vm307, %v365
      %s368 = sadd.s32 %s284, 6
      %s369 = sld [smem:[#allocation4 + %s368]]
      %s370 = scalar_lea.vmem %s2, %s369
      %v371 = vld [vmem:[%s370] sm:$0x1]
      %v372 = vunpack.c.l.bf16 %v371
      %v375 = vunpack.c.l.s4 1983009808
      %v376 = vunpack.c.0.s8 %v375
      %v377 = vlaneseq
      %v378 = vshrl.u32 %v377, 7
      %v379 = vsub.s32 %v376, %v378
      %v380 = vrot.slane %v372, %v379
      %381 = vrot.lane.b32.xlu0 %v380, 64
      %v382 = vpop.permute.xlu0 %381
      %384 = vst.msk [vmem:[#allocation2 + $0x2] sm:$0x3] %vm325, %v382
      %s385 = sadd.s32 %s284, 7
      %s386 = sld [smem:[#allocation4 + %s385]]
      %s387 = scalar_lea.vmem %s2, %s386
      %v388 = vld [vmem:[%s387] sm:$0x1]
      %v389 = vunpack.c.l.bf16 %v388
      %v392 = vunpack.c.l.s4 1983009808
      %v393 = vunpack.c.0.s8 %v392
      %v394 = vlaneseq
      %v395 = vshrl.u32 %v394, 7
      %v396 = vsub.s32 %v393, %v395
      %v397 = vrot.slane %v389, %v396
      %398 = vrot.lane.b32.xlu0 %v397, 96
      %v399 = vpop.permute.xlu0 %398
      %401 = vst.msk [vmem:[#allocation2 + $0x2] sm:$0x3] %vm343, %v399
      %s402 = sadd.s32 %s284, 8
      %s403 = sld [smem:[#allocation4 + %s402]]
      %s404 = scalar_lea.vmem %s2, %s403
      %v405 = vld [vmem:[%s404] sm:$0x1]
      %v406 = vunpack.c.l.bf16 %v405
      %407 = vst.msk [vmem:[#allocation2 + $0x4] sm:$0x3] %vm289, %v406
      %s408 = sadd.s32 %s284, 9
      %s409 = sld [smem:[#allocation4 + %s408]]
      %s410 = scalar_lea.vmem %s2, %s409
      %v411 = vld [vmem:[%s410] sm:$0x1]
      %v412 = vunpack.c.l.bf16 %v411
      %v415 = vunpack.c.l.s4 1983009808
      %v416 = vunpack.c.0.s8 %v415
      %v417 = vlaneseq
      %v418 = vshrl.u32 %v417, 7
      %v419 = vsub.s32 %v416, %v418
      %v420 = vrot.slane %v412, %v419
      %421 = vrot.lane.b32.xlu0 %v420, 32
      %v422 = vpop.permute.xlu0 %421
      %424 = vst.msk [vmem:[#allocation2 + $0x4] sm:$0x3] %vm307, %v422
      %s425 = sadd.s32 %s284, 10
      %s426 = sld [smem:[#allocation4 + %s425]]
      %s427 = scalar_lea.vmem %s2, %s426
      %v428 = vld [vmem:[%s427] sm:$0x1]
      %v429 = vunpack.c.l.bf16 %v428
      %v432 = vunpack.c.l.s4 1983009808
      %v433 = vunpack.c.0.s8 %v432
      %v434 = vlaneseq
      %v435 = vshrl.u32 %v434, 7
      %v436 = vsub.s32 %v433, %v435
      %v437 = vrot.slane %v429, %v436
      %438 = vrot.lane.b32.xlu0 %v437, 64
      %v439 = vpop.permute.xlu0 %438
      %441 = vst.msk [vmem:[#allocation2 + $0x4] sm:$0x3] %vm325, %v439
      %s442 = sadd.s32 %s284, 11
      %s443 = sld [smem:[#allocation4 + %s442]]
      %s444 = scalar_lea.vmem %s2, %s443
      %v445 = vld [vmem:[%s444] sm:$0x1]
      %v446 = vunpack.c.l.bf16 %v445
      %v449 = vunpack.c.l.s4 1983009808
      %v450 = vunpack.c.0.s8 %v449
      %v451 = vlaneseq
      %v452 = vshrl.u32 %v451, 7
      %v453 = vsub.s32 %v450, %v452
      %v454 = vrot.slane %v446, %v453
      %455 = vrot.lane.b32.xlu0 %v454, 96
      %v456 = vpop.permute.xlu0 %455
      %458 = vst.msk [vmem:[#allocation2 + $0x4] sm:$0x3] %vm343, %v456
      %v459 = vld [vmem:[#allocation2] sm:$0x3f]
      %v460 = vpack.c.bf16 %v459, %v459
      %v461 = vld [vmem:[%s267] sm:$0xf]
      %v462 = vld [vmem:[%s267 + $0x4] sm:$0xf]
      %v463 = vld [vmem:[%s267 + $0x8] sm:$0xf]
      %v464 = vld [vmem:[%s267 + $0xc] sm:$0xf]
      %v465 = vld [vmem:[%s267 + $0x10] sm:$0xf]
      %v466 = vld [vmem:[%s267 + $0x14] sm:$0xf]
      %v467 = vld [vmem:[%s267 + $0x18] sm:$0xf]
      %v468 = vld [vmem:[%s267 + $0x1c] sm:$0xf]
      %v469 = vld [vmem:[%s267 + $0x20] sm:$0xf]
      %v470 = vld [vmem:[%s267 + $0x24] sm:$0xf]
      %v471 = vld [vmem:[%s267 + $0x28] sm:$0xf]
      %v472 = vld [vmem:[%s267 + $0x2c] sm:$0xf]
      %v473 = vld [vmem:[%s267 + $0x30] sm:$0xf]
      %v474 = vld [vmem:[%s267 + $0x34] sm:$0xf]
      %v475 = vld [vmem:[%s267 + $0x38] sm:$0xf]
      %v476 = vld [vmem:[%s267 + $0x3c] sm:$0xf]
      %v477 = vld [vmem:[%s270] sm:$0x1]
      %v479 = vlaneseq
      %v480 = vshrl.u32 %v479, 7
      %v481 = vsub.s32 0, %v480
      %v482 = vrot.slane %v477, %v481
      %v500 = vunpack.c.l.b16 %v461
      %v501 = vunpack.c.l.b16 %v462
      %v502 = vunpack.c.l.b16 %v463
      %v503 = vunpack.c.l.b16 %v464
      %v504 = vunpack.c.l.b16 %v465
      %v505 = vunpack.c.l.b16 %v466
      %v506 = vunpack.c.l.b16 %v467
      %v507 = vunpack.c.l.b16 %v468
      %v508 = vunpack.c.l.b16 %v469
      %v509 = vunpack.c.l.b16 %v470
      %v510 = vunpack.c.l.b16 %v471
      %v511 = vunpack.c.l.b16 %v472
      %v512 = vunpack.c.l.b16 %v473
      %v513 = vunpack.c.l.b16 %v474
      %v514 = vunpack.c.l.b16 %v475
      %v515 = vunpack.c.l.b16 %v476
      %v516 = vpack.c.b16 %v501, %v500
      %v517 = vpack.c.b16 %v503, %v502
      %v518 = vpack.c.b16 %v505, %v504
      %v519 = vpack.c.b16 %v507, %v506
      %v520 = vpack.c.b16 %v509, %v508
      %v521 = vpack.c.b16 %v511, %v510
      %v522 = vpack.c.b16 %v513, %v512
      %v523 = vpack.c.b16 %v515, %v514
      %532 = vmatprep.subr.bf16.mxu0 0
      %533 = vmatpush1.bf16.msra.mxu0 %v523
      %534 = vmatprep.subr.bf16.mxu0 0
      %535 = vmatpush1.bf16.msra.mxu0 %v522
      %536 = vmatprep.subr.bf16.mxu0 0
      %537 = vmatpush1.bf16.msra.mxu0 %v521
      %538 = vmatprep.subr.bf16.mxu0 0
      %539 = vmatpush1.bf16.msra.mxu0 %v520
      %540 = vmatprep.subr.bf16.mxu0 0
      %541 = vmatpush1.bf16.msra.mxu0 %v519
      %542 = vmatprep.subr.bf16.mxu0 0
      %543 = vmatpush1.bf16.msra.mxu0 %v518
      %544 = vmatprep.subr.bf16.mxu0 0
      %545 = vmatpush1.bf16.msra.mxu0 %v517
      %546 = vmatprep.subr.bf16.mxu0 0
      %547 = vmatpush1.bf16.msra.mxu0 %v516
      %548 = vmatprep.subr.bf16.mxu0 0
      %549 = vmatpush2.bf16.msra.mxu0 0
      %550 = vmatprep.subr.bf16.mxu0 0
      %551 = vmatpush2.bf16.msra.mxu0 0
      %552 = vmatprep.subr.bf16.mxu0 0
      %553 = vmatpush2.bf16.msra.mxu0 0
      %554 = vmatprep.subr.bf16.mxu0 0
      %555 = vmatpush2.bf16.msra.mxu0 0
      %556 = vmatprep.subr.bf16.mxu0 0
      %557 = vmatpush2.bf16.msra.mxu0 0
      %558 = vmatprep.subr.bf16.mxu0 0
      %559 = vmatpush2.bf16.msra.mxu0 0
      %560 = vmatprep.subr.bf16.mxu0 0
      %561 = vmatpush2.bf16.msra.mxu0 0
      %562 = vmatprep.subr.bf16.mxu0 0
      %563 = vmatpush2.bf16.msra.mxu0 0
      %564 = vmatprep.mubr.bf16.mxu0 0
      %565 = vmatmul.mubr.bf16.gmra.mxu0 %v460
      %v566 = vpop.f32.mrf.mxu0
      %v567 = vadd.f32 %v482, %v566
      %v568 = vpop.f32.mrf.mxu0
      %v569 = vpop.f32.mrf.mxu0
      %v570 = vpop.f32.mrf.mxu0
      %571 = vdwg.mxu0
      %v572 = vmax.f32 %v567, 0.0
      %v573 = vpack.c.bf16 %v572, %v572
      %v574 = vld [vmem:[%s275] sm:$0xf]
      %v575 = vld [vmem:[%s275 + $0x4] sm:$0xf]
      %v576 = vld [vmem:[%s275 + $0x8] sm:$0xf]
      %v577 = vld [vmem:[%s275 + $0xc] sm:$0xf]
      %v578 = vld [vmem:[%s275 + $0x10] sm:$0xf]
      %v579 = vld [vmem:[%s275 + $0x14] sm:$0xf]
      %v580 = vld [vmem:[%s275 + $0x18] sm:$0xf]
      %v581 = vld [vmem:[%s275 + $0x1c] sm:$0xf]
      %v582 = vld [vmem:[%s275 + $0x20] sm:$0xf]
      %v583 = vld [vmem:[%s275 + $0x24] sm:$0xf]
      %v584 = vld [vmem:[%s275 + $0x28] sm:$0xf]
      %v585 = vld [vmem:[%s275 + $0x2c] sm:$0xf]
      %v586 = vld [vmem:[%s275 + $0x30] sm:$0xf]
      %v587 = vld [vmem:[%s275 + $0x34] sm:$0xf]
      %v588 = vld [vmem:[%s275 + $0x38] sm:$0xf]
      %v589 = vld [vmem:[%s275 + $0x3c] sm:$0xf]
      %v590 = vld [vmem:[%s278] sm:$0x1]
      %v592 = vlaneseq
      %v593 = vshrl.u32 %v592, 7
      %v594 = vsub.s32 0, %v593
      %v595 = vrot.slane %v590, %v594
      %v613 = vunpack.c.l.b16 %v574
      %v614 = vunpack.c.l.b16 %v575
      %v615 = vunpack.c.l.b16 %v576
      %v616 = vunpack.c.l.b16 %v577
      %v617 = vunpack.c.l.b16 %v578
      %v618 = vunpack.c.l.b16 %v579
      %v619 = vunpack.c.l.b16 %v580
      %v620 = vunpack.c.l.b16 %v581
      %v621 = vunpack.c.l.b16 %v582
      %v622 = vunpack.c.l.b16 %v583
      %v623 = vunpack.c.l.b16 %v584
      %v624 = vunpack.c.l.b16 %v585
      %v625 = vunpack.c.l.b16 %v586
      %v626 = vunpack.c.l.b16 %v587
      %v627 = vunpack.c.l.b16 %v588
      %v628 = vunpack.c.l.b16 %v589
      %v629 = vpack.c.b16 %v614, %v613
      %v630 = vpack.c.b16 %v616, %v615
      %v631 = vpack.c.b16 %v618, %v617
      %v632 = vpack.c.b16 %v620, %v619
      %v633 = vpack.c.b16 %v622, %v621
      %v634 = vpack.c.b16 %v624, %v623
      %v635 = vpack.c.b16 %v626, %v625
      %v636 = vpack.c.b16 %v628, %v627
      %645 = vmatprep.subr.bf16.mxu0 0
      %646 = vmatpush1.bf16.msra.mxu0 %v636
      %647 = vmatprep.subr.bf16.mxu0 0
      %648 = vmatpush1.bf16.msra.mxu0 %v635
      %649 = vmatprep.subr.bf16.mxu0 0
      %650 = vmatpush1.bf16.msra.mxu0 %v634
      %651 = vmatprep.subr.bf16.mxu0 0
      %652 = vmatpush1.bf16.msra.mxu0 %v633
      %653 = vmatprep.subr.bf16.mxu0 0
      %654 = vmatpush1.bf16.msra.mxu0 %v632
      %655 = vmatprep.subr.bf16.mxu0 0
      %656 = vmatpush1.bf16.msra.mxu0 %v631
      %657 = vmatprep.subr.bf16.mxu0 0
      %658 = vmatpush1.bf16.msra.mxu0 %v630
      %659 = vmatprep.subr.bf16.mxu0 0
      %660 = vmatpush1.bf16.msra.mxu0 %v629
      %661 = vmatprep.subr.bf16.mxu0 0
      %662 = vmatpush2.bf16.msra.mxu0 0
      %663 = vmatprep.subr.bf16.mxu0 0
      %664 = vmatpush2.bf16.msra.mxu0 0
      %665 = vmatprep.subr.bf16.mxu0 0
      %666 = vmatpush2.bf16.msra.mxu0 0
      %667 = vmatprep.subr.bf16.mxu0 0
      %668 = vmatpush2.bf16.msra.mxu0 0
      %669 = vmatprep.subr.bf16.mxu0 0
      %670 = vmatpush2.bf16.msra.mxu0 0
      %671 = vmatprep.subr.bf16.mxu0 0
      %672 = vmatpush2.bf16.msra.mxu0 0
      %673 = vmatprep.subr.bf16.mxu0 0
      %674 = vmatpush2.bf16.msra.mxu0 0
      %675 = vmatprep.subr.bf16.mxu0 0
      %676 = vmatpush2.bf16.msra.mxu0 0
      %677 = vmatprep.mubr.bf16.mxu0 0
      %678 = vmatmul.mubr.bf16.gmra.mxu0 %v573
      %v679 = vpop.f32.mrf.mxu0
      %v680 = vadd.f32 %v595, %v679
      %v681 = vpop.f32.mrf.mxu0
      %v682 = vpop.f32.mrf.mxu0
      %v683 = vpop.f32.mrf.mxu0
      %684 = vdwg.mxu0
      %s685 = sld [smem:[#allocation5 + %s28]]
      %p686 = scmp.gt.s32.totalorder %s685, 0
      %s687 = scalar_select %p686, 1.0, 0.0
      %v688 = vstv %s687
      %v689 = vmul.f32 %v688, %v680
      %v690 = vadd.f32 %v689, 0.0
      %p691 = scmp.gt.s32.totalorder %s685, 1
      %s692 = scalar_select %p691, 1.0, 0.0
      %v693 = vstv %s692
      %v694 = vmul.f32 %v693, %v680
      %v696 = vrot.slane %v694, 2
      %v698 = vadd.f32 %v690, %v696
      %p699 = scmp.gt.s32.totalorder %s685, 2
      %s700 = scalar_select %p699, 1.0, 0.0
      %v701 = vstv %s700
      %v702 = vmul.f32 %v701, %v680
      %v704 = vrot.slane %v702, 4
      %v706 = vadd.f32 %v698, %v704
      %707 = vst [vmem:[%s282] sm:$0x3] %v706
      %p708 = scmp.lt.s32.totalorder %s28, 2
      %s709 = scalar_select %p708, %s28, 2
      %s710 = smul.addr %s709, 2
      %s711 = scalar_lea.vmem %s7, %s710
      // Predicated region
      $region41: #{_forward_impl.3} parent=39 // pred_check
        %p712 = pneg %p171
      $region42: #{_forward_impl.3} parent=39 // pred_check_branch
        %714 = sbr.rel (%p712) target = $region44
      $region43: #{_forward_impl.3} parent=39 // pred_region
        _
      $region44: #{_forward_impl.3} parent=39 // pred_fallthru
        _
    $region40: #{_forward_impl.3} parent=5 // pred_fallthru
      _
    %p715 = scmp.le.s32.totalorder 2, %s23
    // Predicated region
    $region45: #{_forward_impl.3} parent=5 // pred_check
      %p716 = pneg %p715
    $region46: #{_forward_impl.3} parent=5 // pred_check_branch
      %718 = sbr.rel (%p716) target = $region48
    $region47: #{_forward_impl.3} parent=5 // pred_region
      %s719 = ssub.s32 %s23, 2
      // Predicated region
      $region49: #{_forward_impl.3} parent=47 // pred_check
        %p720 = pneg %p177
      $region50: #{_forward_impl.3} parent=47 // pred_check_branch
        %722 = sbr.rel (%p720) target = $region52
      $region51: #{_forward_impl.3} parent=47 // pred_region
        %p723 = scmp.lt.s32.totalorder %s29, 2
        %s724 = scalar_select %p723, %s29, 2
        %s725 = smul.addr %s724, 2
        %s726 = scalar_lea.vmem %s7, %s725
      $region52: #{_forward_impl.3} parent=47 // pred_fallthru
        _
    $region48: #{_forward_impl.3} parent=5 // pred_fallthru
      _
  $region6: #{_forward_impl.3} parent=0 // loop_footer
    %s27 = sadd.s32 1, %s23
  $region7: #{_forward_impl.3} parent=0 // loop_footer_branch
    %22 = sbr.rel target = $region3
  $region8: #{_forward_impl.3} parent=0 // loop_exit
    _

// kernel: _forward_impl.2
$region0: #{_forward_impl.2}
  #allocation0 [shape = 'u32[]', space=smem, size = 0x4, offset = 0x4, fixed_abs, tag = 'smem constant byte address 0x4 - core index']
  #allocation1 [shape = 'u32[144,128]{1,0:T(1,128)}', space=vmem, size = 0x12000, scoped, tag = 'internal scratch']
  %s0 = inlined_call_operand.vmem [shape: f32[16,1024], index: 0, kind: input, shape index: {}]
  %s1 = inlined_call_operand.vmem [shape: bf16[1024,32], index: 1, kind: input, shape index: {}]
  %s2 = inlined_call_operand.vmem [shape: f32[1,32], index: 2, kind: input, shape index: {}]
  %s3 = inlined_call_operand.vmem [shape: bf16[16,32], index: 3, kind: output, shape index: {}]
  %s4 = sld [smem:[#allocation0]]
  $region22: #{_forward_impl.2} parent=0
    _
  %s6 = ssub.s32 1, %s4
  %s7 = scalar_select 0, %s6, %s4
  // Predicated region
  $region2: #{_forward_impl.2} parent=0 // pred_check
    _
  $region3: #{_forward_impl.2} parent=0 // pred_check_branch
    %9 = sbr.rel (0) target = $region5
  $region4: #{_forward_impl.2} parent=0 // pred_region
    _
  $region5: #{_forward_impl.2} parent=0 // pred_fallthru
    _
  // Predicated region
  $region6: #{_forward_impl.2} parent=0 // pred_check
    _
  $region7: #{_forward_impl.2} parent=0 // pred_check_branch
    %11 = sbr.rel (0) target = $region9
  $region8: #{_forward_impl.2} parent=0 // pred_region
    _
  $region9: #{_forward_impl.2} parent=0 // pred_fallthru
    _
  // Predicated region
  $region10: #{_forward_impl.2} parent=0 // pred_check
    _
  $region11: #{_forward_impl.2} parent=0 // pred_check_branch
    %13 = sbr.rel (0) target = $region13
  $region12: #{_forward_impl.2} parent=0 // pred_region
    _
  $region13: #{_forward_impl.2} parent=0 // pred_fallthru
    _
  %v15 = vld [vmem:[%s0] sm:$0xff]
  %v16 = vld [vmem:[%s0 + $0x8] sm:$0xff]
  %v17 = vld [vmem:[%s0 + $0x10] sm:$0xff]
  %v18 = vld [vmem:[%s0 + $0x18] sm:$0xff]
  %v19 = vld [vmem:[%s0 + $0x20] sm:$0xff]
  %v20 = vld [vmem:[%s0 + $0x28] sm:$0xff]
  %v21 = vld [vmem:[%s0 + $0x30] sm:$0xff]
  %v22 = vld [vmem:[%s0 + $0x38] sm:$0xff]
  %v23 = vld [vmem:[%s0 + $0x40] sm:$0xff]
  %v24 = vld [vmem:[%s0 + $0x48] sm:$0xff]
  %v25 = vld [vmem:[%s0 + $0x50] sm:$0xff]
  %v26 = vld [vmem:[%s0 + $0x58] sm:$0xff]
  %v27 = vld [vmem:[%s0 + $0x60] sm:$0xff]
  %v28 = vld [vmem:[%s0 + $0x68] sm:$0xff]
  %v29 = vld [vmem:[%s0 + $0x70] sm:$0xff]
  %v30 = vld [vmem:[%s0 + $0x78] sm:$0xff]
  %v31 = vpack.c.bf16 %v23, %v15
  %v32 = vpack.c.bf16 %v24, %v16
  %v33 = vpack.c.bf16 %v25, %v17
  %v34 = vpack.c.bf16 %v26, %v18
  %v35 = vpack.c.bf16 %v27, %v19
  %v36 = vpack.c.bf16 %v28, %v20
  %v37 = vpack.c.bf16 %v29, %v21
  %v38 = vpack.c.bf16 %v30, %v22
  %v39 = vld [vmem:[%s1] sm:$0xf]
  %v40 = vld [vmem:[%s1 + $0x4] sm:$0xf]
  %v41 = vld [vmem:[%s1 + $0x8] sm:$0xf]
  %v42 = vld [vmem:[%s1 + $0xc] sm:$0xf]
  %v43 = vld [vmem:[%s1 + $0x10] sm:$0xf]
  %v44 = vld [vmem:[%s1 + $0x14] sm:$0xf]
  %v45 = vld [vmem:[%s1 + $0x18] sm:$0xf]
  %v46 = vld [vmem:[%s1 + $0x1c] sm:$0xf]
  %v47 = vld [vmem:[%s1 + $0x20] sm:$0xf]
  %v48 = vld [vmem:[%s1 + $0x24] sm:$0xf]
  %v49 = vld [vmem:[%s1 + $0x28] sm:$0xf]
  %v50 = vld [vmem:[%s1 + $0x2c] sm:$0xf]
  %v51 = vld [vmem:[%s1 + $0x30] sm:$0xf]
  %v52 = vld [vmem:[%s1 + $0x34] sm:$0xf]
  %v53 = vld [vmem:[%s1 + $0x38] sm:$0xf]
  %v54 = vld [vmem:[%s1 + $0x3c] sm:$0xf]
  %v55 = vld [vmem:[%s1 + $0x40] sm:$0xf]
  %v56 = vld [vmem:[%s1 + $0x44] sm:$0xf]
  %v57 = vld [vmem:[%s1 + $0x48] sm:$0xf]
  %v58 = vld [vmem:[%s1 + $0x4c] sm:$0xf]
  %v59 = vld [vmem:[%s1 + $0x50] sm:$0xf]
  %v60 = vld [vmem:[%s1 + $0x54] sm:$0xf]
  %v61 = vld [vmem:[%s1 + $0x58] sm:$0xf]
  %v62 = vld [vmem:[%s1 + $0x5c] sm:$0xf]
  %v63 = vld [vmem:[%s1 + $0x60] sm:$0xf]
  %v64 = vld [vmem:[%s1 + $0x64] sm:$0xf]
  %v65 = vld [vmem:[%s1 + $0x68] sm:$0xf]
  %v66 = vld [vmem:[%s1 + $0x6c] sm:$0xf]
  %v67 = vld [vmem:[%s1 + $0x70] sm:$0xf]
  %v68 = vld [vmem:[%s1 + $0x74] sm:$0xf]
  %v69 = vld [vmem:[%s1 + $0x78] sm:$0xf]
  %v70 = vld [vmem:[%s1 + $0x7c] sm:$0xf]
  %v71 = vld [vmem:[%s1 + $0x80] sm:$0xf]
  %v72 = vld [vmem:[%s1 + $0x84] sm:$0xf]
  %v73 = vld [vmem:[%s1 + $0x88] sm:$0xf]
  %v74 = vld [vmem:[%s1 + $0x8c] sm:$0xf]
  %v75 = vld [vmem:[%s1 + $0x90] sm:$0xf]
  %v76 = vld [vmem:[%s1 + $0x94] sm:$0xf]
  %v77 = vld [vmem:[%s1 + $0x98] sm:$0xf]
  %v78 = vld [vmem:[%s1 + $0x9c] sm:$0xf]
  %v79 = vld [vmem:[%s1 + $0xa0] sm:$0xf]
  %v80 = vld [vmem:[%s1 + $0xa4] sm:$0xf]
  %v81 = vld [vmem:[%s1 + $0xa8] sm:$0xf]
  %v82 = vld [vmem:[%s1 + $0xac] sm:$0xf]
  %v83 = vld [vmem:[%s1 + $0xb0] sm:$0xf]
  %v84 = vld [vmem:[%s1 + $0xb4] sm:$0xf]
  %v85 = vld [vmem:[%s1 + $0xb8] sm:$0xf]
  %v86 = vld [vmem:[%s1 + $0xbc] sm:$0xf]
  %v87 = vld [vmem:[%s1 + $0xc0] sm:$0xf]
  %v88 = vld [vmem:[%s1 + $0xc4] sm:$0xf]
  %v89 = vld [vmem:[%s1 + $0xc8] sm:$0xf]
  %v90 = vld [vmem:[%s1 + $0xcc] sm:$0xf]
  %v91 = vld [vmem:[%s1 + $0xd0] sm:$0xf]
  %v92 = vld [vmem:[%s1 + $0xd4] sm:$0xf]
  %v93 = vld [vmem:[%s1 + $0xd8] sm:$0xf]
  %v94 = vld [vmem:[%s1 + $0xdc] sm:$0xf]
  %v95 = vld [vmem:[%s1 + $0xe0] sm:$0xf]
  %v96 = vld [vmem:[%s1 + $0xe4] sm:$0xf]
  %v97 = vld [vmem:[%s1 + $0xe8] sm:$0xf]
  %v98 = vld [vmem:[%s1 + $0xec] sm:$0xf]
  %v99 = vld [vmem:[%s1 + $0xf0] sm:$0xf]
  %v100 = vld [vmem:[%s1 + $0xf4] sm:$0xf]
  %v101 = vld [vmem:[%s1 + $0xf8] sm:$0xf]
  %v102 = vld [vmem:[%s1 + $0xfc] sm:$0xf]
  %v103 = vld [vmem:[%s1 + $0x100] sm:$0xf]
  %v104 = vld [vmem:[%s1 + $0x104] sm:$0xf]
  %v105 = vld [vmem:[%s1 + $0x108] sm:$0xf]
  %v106 = vld [vmem:[%s1 + $0x10c] sm:$0xf]
  %v107 = vld [vmem:[%s1 + $0x110] sm:$0xf]
  %v108 = vld [vmem:[%s1 + $0x114] sm:$0xf]
  %v109 = vld [vmem:[%s1 + $0x118] sm:$0xf]
  %v110 = vld [vmem:[%s1 + $0x11c] sm:$0xf]
  %v111 = vld [vmem:[%s1 + $0x120] sm:$0xf]
  %v112 = vld [vmem:[%s1 + $0x124] sm:$0xf]
  %v113 = vld [vmem:[%s1 + $0x128] sm:$0xf]
  %v114 = vld [vmem:[%s1 + $0x12c] sm:$0xf]
  %v115 = vld [vmem:[%s1 + $0x130] sm:$0xf]
  %v116 = vld [vmem:[%s1 + $0x134] sm:$0xf]
  %v117 = vld [vmem:[%s1 + $0x138] sm:$0xf]
  %v118 = vld [vmem:[%s1 + $0x13c] sm:$0xf]
  %v119 = vld [vmem:[%s1 + $0x140] sm:$0xf]
  %v120 = vld [vmem:[%s1 + $0x144] sm:$0xf]
  %v121 = vld [vmem:[%s1 + $0x148] sm:$0xf]
  %v122 = vld [vmem:[%s1 + $0x14c] sm:$0xf]
  %v123 = vld [vmem:[%s1 + $0x150] sm:$0xf]
  %v124 = vld [vmem:[%s1 + $0x154] sm:$0xf]
  %v125 = vld [vmem:[%s1 + $0x158] sm:$0xf]
  %v126 = vld [vmem:[%s1 + $0x15c] sm:$0xf]
  %v127 = vld [vmem:[%s1 + $0x160] sm:$0xf]
  %v128 = vld [vmem:[%s1 + $0x164] sm:$0xf]
  %v129 = vld [vmem:[%s1 + $0x168] sm:$0xf]
  %v130 = vld [vmem:[%s1 + $0x16c] sm:$0xf]
  %v131 = vld [vmem:[%s1 + $0x170] sm:$0xf]
  %v132 = vld [vmem:[%s1 + $0x174] sm:$0xf]
  %v133 = vld [vmem:[%s1 + $0x178] sm:$0xf]
  %v134 = vld [vmem:[%s1 + $0x17c] sm:$0xf]
  %v135 = vld [vmem:[%s1 + $0x180] sm:$0xf]
  %v136 = vld [vmem:[%s1 + $0x184] sm:$0xf]
  %v137 = vld [vmem:[%s1 + $0x188] sm:$0xf]
  %v138 = vld [vmem:[%s1 + $0x18c] sm:$0xf]
  %v139 = vld [vmem:[%s1 + $0x190] sm:$0xf]
  %v140 = vld [vmem:[%s1 + $0x194] sm:$0xf]
  %v141 = vld [vmem:[%s1 + $0x198] sm:$0xf]
  %v142 = vld [vmem:[%s1 + $0x19c] sm:$0xf]
  %v143 = vld [vmem:[%s1 + $0x1a0] sm:$0xf]
  %v144 = vld [vmem:[%s1 + $0x1a4] sm:$0xf]
  %v145 = vld [vmem:[%s1 + $0x1a8] sm:$0xf]
  %v146 = vld [vmem:[%s1 + $0x1ac] sm:$0xf]
  %v147 = vld [vmem:[%s1 + $0x1b0] sm:$0xf]
  %v148 = vld [vmem:[%s1 + $0x1b4] sm:$0xf]
  %v149 = vld [vmem:[%s1 + $0x1b8] sm:$0xf]
  %v150 = vld [vmem:[%s1 + $0x1bc] sm:$0xf]
  %v151 = vld [vmem:[%s1 + $0x1c0] sm:$0xf]
  %v152 = vld [vmem:[%s1 + $0x1c4] sm:$0xf]
  %v153 = vld [vmem:[%s1 + $0x1c8] sm:$0xf]
  %v154 = vld [vmem:[%s1 + $0x1cc] sm:$0xf]
  %v155 = vld [vmem:[%s1 + $0x1d0] sm:$0xf]
  %v156 = vld [vmem:[%s1 + $0x1d4] sm:$0xf]
  %v157 = vld [vmem:[%s1 + $0x1d8] sm:$0xf]
  %v158 = vld [vmem:[%s1 + $0x1dc] sm:$0xf]
  %v159 = vld [vmem:[%s1 + $0x1e0] sm:$0xf]
  %v160 = vld [vmem:[%s1 + $0x1e4] sm:$0xf]
  %v161 = vld [vmem:[%s1 + $0x1e8] sm:$0xf]
  %v162 = vld [vmem:[%s1 + $0x1ec] sm:$0xf]
  %v163 = vld [vmem:[%s1 + $0x1f0] sm:$0xf]
  %v164 = vld [vmem:[%s1 + $0x1f4] sm:$0xf]
  %v165 = vld [vmem:[%s1 + $0x1f8] sm:$0xf]
  %v166 = vld [vmem:[%s1 + $0x1fc] sm:$0xf]
  %v167 = vld [vmem:[%s2] sm:$0x1]
  %v169 = vlaneseq
  %v170 = vshrl.u32 %v169, 7
  %v171 = vsub.s32 0, %v170
  %v172 = vrot.slane %v167, %v171
  %v302 = vunpack.c.l.b16 %v39
  %v303 = vunpack.c.l.b16 %v40
  %v304 = vunpack.c.l.b16 %v41
  %v305 = vunpack.c.l.b16 %v42
  %v306 = vunpack.c.l.b16 %v43
  %v307 = vunpack.c.l.b16 %v44
  %v308 = vunpack.c.l.b16 %v45
  %v309 = vunpack.c.l.b16 %v46
  %v310 = vunpack.c.l.b16 %v47
  %v311 = vunpack.c.l.b16 %v48
  %v312 = vunpack.c.l.b16 %v49
  %v313 = vunpack.c.l.b16 %v50
  %v314 = vunpack.c.l.b16 %v51
  %v315 = vunpack.c.l.b16 %v52
  %v316 = vunpack.c.l.b16 %v53
  %v317 = vunpack.c.l.b16 %v54
  %v318 = vunpack.c.l.b16 %v55
  %v319 = vunpack.c.l.b16 %v56
  %v320 = vunpack.c.l.b16 %v57
  %v321 = vunpack.c.l.b16 %v58
  %v322 = vunpack.c.l.b16 %v59
  %v323 = vunpack.c.l.b16 %v60
  %v324 = vunpack.c.l.b16 %v61
  %v325 = vunpack.c.l.b16 %v62
  %v326 = vunpack.c.l.b16 %v63
  %v327 = vunpack.c.l.b16 %v64
  %v328 = vunpack.c.l.b16 %v65
  %v329 = vunpack.c.l.b16 %v66
  %v330 = vunpack.c.l.b16 %v67
  %v331 = vunpack.c.l.b16 %v68
  %v332 = vunpack.c.l.b16 %v69
  %v333 = vunpack.c.l.b16 %v70
  %v334 = vunpack.c.l.b16 %v71
  %v335 = vunpack.c.l.b16 %v72
  %v336 = vunpack.c.l.b16 %v73
  %v337 = vunpack.c.l.b16 %v74
  %v338 = vunpack.c.l.b16 %v75
  %v339 = vunpack.c.l.b16 %v76
  %v340 = vunpack.c.l.b16 %v77
  %v341 = vunpack.c.l.b16 %v78
  %v342 = vunpack.c.l.b16 %v79
  %v343 = vunpack.c.l.b16 %v80
  %v344 = vunpack.c.l.b16 %v81
  %v345 = vunpack.c.l.b16 %v82
  %v346 = vunpack.c.l.b16 %v83
  %v347 = vunpack.c.l.b16 %v84
  %v348 = vunpack.c.l.b16 %v85
  %v349 = vunpack.c.l.b16 %v86
  %v350 = vunpack.c.l.b16 %v87
  %v351 = vunpack.c.l.b16 %v88
  %v352 = vunpack.c.l.b16 %v89
  %v353 = vunpack.c.l.b16 %v90
  %v354 = vunpack.c.l.b16 %v91
  %v355 = vunpack.c.l.b16 %v92
  %v356 = vunpack.c.l.b16 %v93
  %v357 = vunpack.c.l.b16 %v94
  %v358 = vunpack.c.l.b16 %v95
  %v359 = vunpack.c.l.b16 %v96
  %v360 = vunpack.c.l.b16 %v97
  %v361 = vunpack.c.l.b16 %v98
  %v362 = vunpack.c.l.b16 %v99
  %v363 = vunpack.c.l.b16 %v100
  %v364 = vunpack.c.l.b16 %v101
  %v365 = vunpack.c.l.b16 %v102
  %v366 = vunpack.c.l.b16 %v103
  %v367 = vunpack.c.l.b16 %v104
  %v368 = vunpack.c.l.b16 %v105
  %v369 = vunpack.c.l.b16 %v106
  %v370 = vunpack.c.l.b16 %v107
  %v371 = vunpack.c.l.b16 %v108
  %v372 = vunpack.c.l.b16 %v109
  %v373 = vunpack.c.l.b16 %v110
  %v374 = vunpack.c.l.b16 %v111
  %v375 = vunpack.c.l.b16 %v112
  %v376 = vunpack.c.l.b16 %v113
  %v377 = vunpack.c.l.b16 %v114
  %v378 = vunpack.c.l.b16 %v115
  %v379 = vunpack.c.l.b16 %v116
  %v380 = vunpack.c.l.b16 %v117
  %v381 = vunpack.c.l.b16 %v118
  %v382 = vunpack.c.l.b16 %v119
  %v383 = vunpack.c.l.b16 %v120
  %v384 = vunpack.c.l.b16 %v121
  %v385 = vunpack.c.l.b16 %v122
  %v386 = vunpack.c.l.b16 %v123
  %v387 = vunpack.c.l.b16 %v124
  %v388 = vunpack.c.l.b16 %v125
  %v389 = vunpack.c.l.b16 %v126
  %v390 = vunpack.c.l.b16 %v127
  %v391 = vunpack.c.l.b16 %v128
  %v392 = vunpack.c.l.b16 %v129
  %v393 = vunpack.c.l.b16 %v130
  %v394 = vunpack.c.l.b16 %v131
  %v395 = vunpack.c.l.b16 %v132
  %v396 = vunpack.c.l.b16 %v133
  %v397 = vunpack.c.l.b16 %v134
  %v398 = vunpack.c.l.b16 %v135
  %v399 = vunpack.c.l.b16 %v136
  %v400 = vunpack.c.l.b16 %v137
  %v401 = vunpack.c.l.b16 %v138
  %v402 = vunpack.c.l.b16 %v139
  %v403 = vunpack.c.l.b16 %v140
  %v404 = vunpack.c.l.b16 %v141
  %v405 = vunpack.c.l.b16 %v142
  %v406 = vunpack.c.l.b16 %v143
  %v407 = vunpack.c.l.b16 %v144
  %v408 = vunpack.c.l.b16 %v145
  %v409 = vunpack.c.l.b16 %v146
  %v410 = vunpack.c.l.b16 %v147
  %v411 = vunpack.c.l.b16 %v148
  %v412 = vunpack.c.l.b16 %v149
  %v413 = vunpack.c.l.b16 %v150
  %v414 = vunpack.c.l.b16 %v151
  %v415 = vunpack.c.l.b16 %v152
  %v416 = vunpack.c.l.b16 %v153
  %v417 = vunpack.c.l.b16 %v154
  %v418 = vunpack.c.l.b16 %v155
  %v419 = vunpack.c.l.b16 %v156
  %v420 = vunpack.c.l.b16 %v157
  %v421 = vunpack.c.l.b16 %v158
  %v422 = vunpack.c.l.b16 %v159
  %v423 = vunpack.c.l.b16 %v160
  %v424 = vunpack.c.l.b16 %v161
  %v425 = vunpack.c.l.b16 %v162
  %v426 = vunpack.c.l.b16 %v163
  %v427 = vunpack.c.l.b16 %v164
  %v428 = vunpack.c.l.b16 %v165
  %v429 = vunpack.c.l.b16 %v166
  %v430 = vpack.c.b16 %v303, %v302
  %v431 = vpack.c.b16 %v305, %v304
  %v432 = vpack.c.b16 %v307, %v306
  %v433 = vpack.c.b16 %v309, %v308
  %v434 = vpack.c.b16 %v311, %v310
  %v435 = vpack.c.b16 %v313, %v312
  %v436 = vpack.c.b16 %v315, %v314
  %v437 = vpack.c.b16 %v317, %v316
  %v438 = vpack.c.b16 %v319, %v318
  %v439 = vpack.c.b16 %v321, %v320
  %v440 = vpack.c.b16 %v323, %v322
  %v441 = vpack.c.b16 %v325, %v324
  %v442 = vpack.c.b16 %v327, %v326
  %v443 = vpack.c.b16 %v329, %v328
  %v444 = vpack.c.b16 %v331, %v330
  %v445 = vpack.c.b16 %v333, %v332
  %v446 = vpack.c.b16 %v335, %v334
  %v447 = vpack.c.b16 %v337, %v336
  %v448 = vpack.c.b16 %v339, %v338
  %v449 = vpack.c.b16 %v341, %v340
  %v450 = vpack.c.b16 %v343, %v342
  %v451 = vpack.c.b16 %v345, %v344
  %v452 = vpack.c.b16 %v347, %v346
  %v453 = vpack.c.b16 %v349, %v348
  %v454 = vpack.c.b16 %v351, %v350
  %v455 = vpack.c.b16 %v353, %v352
  %v456 = vpack.c.b16 %v355, %v354
  %v457 = vpack.c.b16 %v357, %v356
  %v458 = vpack.c.b16 %v359, %v358
  %v459 = vpack.c.b16 %v361, %v360
  %v460 = vpack.c.b16 %v363, %v362
  %v461 = vpack.c.b16 %v365, %v364
  %v462 = vpack.c.b16 %v367, %v366
  %v463 = vpack.c.b16 %v369, %v368
  %v464 = vpack.c.b16 %v371, %v370
  %v465 = vpack.c.b16 %v373, %v372
  %v466 = vpack.c.b16 %v375, %v374
  %v467 = vpack.c.b16 %v377, %v376
  %v468 = vpack.c.b16 %v379, %v378
  %v469 = vpack.c.b16 %v381, %v380
  %v470 = vpack.c.b16 %v383, %v382
  %v471 = vpack.c.b16 %v385, %v384
  %v472 = vpack.c.b16 %v387, %v386
  %v473 = vpack.c.b16 %v389, %v388
  %v474 = vpack.c.b16 %v391, %v390
  %v475 = vpack.c.b16 %v393, %v392
  %v476 = vpack.c.b16 %v395, %v394
  %v477 = vpack.c.b16 %v397, %v396
  %v478 = vpack.c.b16 %v399, %v398
  %v479 = vpack.c.b16 %v401, %v400
  %v480 = vpack.c.b16 %v403, %v402
  %v481 = vpack.c.b16 %v405, %v404
  %v482 = vpack.c.b16 %v407, %v406
  %v483 = vpack.c.b16 %v409, %v408
  %v484 = vpack.c.b16 %v411, %v410
  %v485 = vpack.c.b16 %v413, %v412
  %v486 = vpack.c.b16 %v415, %v414
  %v487 = vpack.c.b16 %v417, %v416
  %v488 = vpack.c.b16 %v419, %v418
  %v489 = vpack.c.b16 %v421, %v420
  %v490 = vpack.c.b16 %v423, %v422
  %v491 = vpack.c.b16 %v425, %v424
  %v492 = vpack.c.b16 %v427, %v426
  %v493 = vpack.c.b16 %v429, %v428
  %558 = vmatprep.subr.bf16.mxu0 0
  %559 = vmatpush1.bf16.msra.mxu0 %v437
  %560 = vmatprep.subr.bf16.mxu0 0
  %561 = vmatpush1.bf16.msra.mxu0 %v436
  %562 = vmatprep.subr.bf16.mxu0 0
  %563 = vmatpush1.bf16.msra.mxu0 %v435
  %564 = vmatprep.subr.bf16.mxu0 0
  %565 = vmatpush1.bf16.msra.mxu0 %v434
  %566 = vmatprep.subr.bf16.mxu0 0
  %567 = vmatpush1.bf16.msra.mxu0 %v433
  %568 = vmatprep.subr.bf16.mxu0 0
  %569 = vmatpush1.bf16.msra.mxu0 %v432
  %570 = vmatprep.subr.bf16.mxu0 0
  %571 = vmatpush1.bf16.msra.mxu0 %v431
  %572 = vmatprep.subr.bf16.mxu0 0
  %573 = vmatpush1.bf16.msra.mxu0 %v430
  %574 = vmatprep.subr.bf16.mxu0 0
  %575 = vmatpush2.bf16.msra.mxu0 %v445
  %576 = vmatprep.subr.bf16.mxu0 0
  %577 = vmatpush2.bf16.msra.mxu0 %v444
  %578 = vmatprep.subr.bf16.mxu0 0
  %579 = vmatpush2.bf16.msra.mxu0 %v443
  %580 = vmatprep.subr.bf16.mxu0 0
  %581 = vmatpush2.bf16.msra.mxu0 %v442
  %582 = vmatprep.subr.bf16.mxu0 0
  %583 = vmatpush2.bf16.msra.mxu0 %v441
  %584 = vmatprep.subr.bf16.mxu0 0
  %585 = vmatpush2.bf16.msra.mxu0 %v440
  %586 = vmatprep.subr.bf16.mxu0 0
  %587 = vmatpush2.bf16.msra.mxu0 %v439
  %588 = vmatprep.subr.bf16.mxu0 0
  %589 = vmatpush2.bf16.msra.mxu0 %v438
  %590 = vmatprep.mubr.bf16.mxu0 %v32
  %591 = vmatmul.mubr.bf16.gmra.mxu0 %v31
  %v592 = vpop.f32.mrf.mxu0
  %v593 = vadd.f32 %v172, %v592
  %v594 = vpop.f32.mrf.mxu0
  %v595 = vpop.f32.mrf.mxu0
  %v596 = vadd.f32 %v172, %v595
  %v597 = vpop.f32.mrf.mxu0
  %598 = vdwg.mxu0
  %599 = vmatprep.subr.bf16.mxu0 0
  %600 = vmatpush1.bf16.msra.mxu0 %v453
  %601 = vmatprep.subr.bf16.mxu0 0
  %602 = vmatpush1.bf16.msra.mxu0 %v452
  %603 = vmatprep.subr.bf16.mxu0 0
  %604 = vmatpush1.bf16.msra.mxu0 %v451
  %605 = vmatprep.subr.bf16.mxu0 0
  %606 = vmatpush1.bf16.msra.mxu0 %v450
  %607 = vmatprep.subr.bf16.mxu0 0
  %608 = vmatpush1.bf16.msra.mxu0 %v449
  %609 = vmatprep.subr.bf16.mxu0 0
  %610 = vmatpush1.bf16.msra.mxu0 %v448
  %611 = vmatprep.subr.bf16.mxu0 0
  %612 = vmatpush1.bf16.msra.mxu0 %v447
  %613 = vmatprep.subr.bf16.mxu0 0
  %614 = vmatpush1.bf16.msra.mxu0 %v446
  %615 = vmatprep.subr.bf16.mxu0 0
  %616 = vmatpush2.bf16.msra.mxu0 %v461
  %617 = vmatprep.subr.bf16.mxu0 0
  %618 = vmatpush2.bf16.msra.mxu0 %v460
  %619 = vmatprep.subr.bf16.mxu0 0
  %620 = vmatpush2.bf16.msra.mxu0 %v459
  %621 = vmatprep.subr.bf16.mxu0 0
  %622 = vmatpush2.bf16.msra.mxu0 %v458
  %623 = vmatprep.subr.bf16.mxu0 0
  %624 = vmatpush2.bf16.msra.mxu0 %v457
  %625 = vmatprep.subr.bf16.mxu0 0
  %626 = vmatpush2.bf16.msra.mxu0 %v456
  %627 = vmatprep.subr.bf16.mxu0 0
  %628 = vmatpush2.bf16.msra.mxu0 %v455
  %629 = vmatprep.subr.bf16.mxu0 0
  %630 = vmatpush2.bf16.msra.mxu0 %v454
  %631 = vmatprep.mubr.bf16.mxu0 %v34
  %632 = vmatmul.mubr.bf16.gmra.mxu0 %v33
  %v633 = vpop.f32.mrf.mxu0
  %v634 = vadd.f32 %v593, %v633
  %v635 = vpop.f32.mrf.mxu0
  %v636 = vpop.f32.mrf.mxu0
  %v637 = vadd.f32 %v596, %v636
  %v638 = vpop.f32.mrf.mxu0
  %639 = vdwg.mxu0
  %640 = vmatprep.subr.bf16.mxu0 0
  %641 = vmatpush1.bf16.msra.mxu0 %v469
  %642 = vmatprep.subr.bf16.mxu0 0
  %643 = vmatpush1.bf16.msra.mxu0 %v468
  %644 = vmatprep.subr.bf16.mxu0 0
  %645 = vmatpush1.bf16.msra.mxu0 %v467
  %646 = vmatprep.subr.bf16.mxu0 0
  %647 = vmatpush1.bf16.msra.mxu0 %v466
  %648 = vmatprep.subr.bf16.mxu0 0
  %649 = vmatpush1.bf16.msra.mxu0 %v465
  %650 = vmatprep.subr.bf16.mxu0 0
  %651 = vmatpush1.bf16.msra.mxu0 %v464
  %652 = vmatprep.subr.bf16.mxu0 0
  %653 = vmatpush1.bf16.msra.mxu0 %v463
  %654 = vmatprep.subr.bf16.mxu0 0
  %655 = vmatpush1.bf16.msra.mxu0 %v462
  %656 = vmatprep.subr.bf16.mxu0 0
  %657 = vmatpush2.bf16.msra.mxu0 %v477
  %658 = vmatprep.subr.bf16.mxu0 0
  %659 = vmatpush2.bf16.msra.mxu0 %v476
  %660 = vmatprep.subr.bf16.mxu0 0
  %661 = vmatpush2.bf16.msra.mxu0 %v475
  %662 = vmatprep.subr.bf16.mxu0 0
  %663 = vmatpush2.bf16.msra.mxu0 %v474
  %664 = vmatprep.subr.bf16.mxu0 0
  %665 = vmatpush2.bf16.msra.mxu0 %v473
  %666 = vmatprep.subr.bf16.mxu0 0
  %667 = vmatpush2.bf16.msra.mxu0 %v472
  %668 = vmatprep.subr.bf16.mxu0 0
  %669 = vmatpush2.bf16.msra.mxu0 %v471
  %670 = vmatprep.subr.bf16.mxu0 0
  %671 = vmatpush2.bf16.msra.mxu0 %v470
  %672 = vmatprep.mubr.bf16.mxu0 %v36
  %673 = vmatmul.mubr.bf16.gmra.mxu0 %v35
  %v674 = vpop.f32.mrf.mxu0
  %v675 = vadd.f32 %v634, %v674
  %v676 = vpop.f32.mrf.mxu0
  %v677 = vpop.f32.mrf.mxu0
  %v678 = vadd.f32 %v637, %v677
  %v679 = vpop.f32.mrf.mxu0
  %680 = vdwg.mxu0
  %681 = vmatprep.subr.bf16.mxu0 0
  %682 = vmatpush1.bf16.msra.mxu0 %v485
  %683 = vmatprep.subr.bf16.mxu0 0
  %684 = vmatpush1.bf16.msra.mxu0 %v484
  %685 = vmatprep.subr.bf16.mxu0 0
  %686 = vmatpush1.bf16.msra.mxu0 %v483
  %687 = vmatprep.subr.bf16.mxu0 0
  %688 = vmatpush1.bf16.msra.mxu0 %v482
  %689 = vmatprep.subr.bf16.mxu0 0
  %690 = vmatpush1.bf16.msra.mxu0 %v481
  %691 = vmatprep.subr.bf16.mxu0 0
  %692 = vmatpush1.bf16.msra.mxu0 %v480
  %693 = vmatprep.subr.bf16.mxu0 0
  %694 = vmatpush1.bf16.msra.mxu0 %v479
  %695 = vmatprep.subr.bf16.mxu0 0
  %696 = vmatpush1.bf16.msra.mxu0 %v478
  %697 = vmatprep.subr.bf16.mxu0 0
  %698 = vmatpush2.bf16.msra.mxu0 %v493
  %699 = vmatprep.subr.bf16.mxu0 0
  %700 = vmatpush2.bf16.msra.mxu0 %v492
  %701 = vmatprep.subr.bf16.mxu0 0
  %702 = vmatpush2.bf16.msra.mxu0 %v491
  %703 = vmatprep.subr.bf16.mxu0 0
  %704 = vmatpush2.bf16.msra.mxu0 %v490
  %705 = vmatprep.subr.bf16.mxu0 0
  %706 = vmatpush2.bf16.msra.mxu0 %v489
  %707 = vmatprep.subr.bf16.mxu0 0
  %708 = vmatpush2.bf16.msra.mxu0 %v488
  %709 = vmatprep.subr.bf16.mxu0 0
  %710 = vmatpush2.bf16.msra.mxu0 %v487
  %711 = vmatprep.subr.bf16.mxu0 0
  %712 = vmatpush2.bf16.msra.mxu0 %v486
  %713 = vmatprep.mubr.bf16.mxu0 %v38
  %714 = vmatmul.mubr.bf16.gmra.mxu0 %v37
  %v715 = vpop.f32.mrf.mxu0
  %v716 = vadd.f32 %v675, %v715
  %v717 = vpop.f32.mrf.mxu0
  %v718 = vpop.f32.mrf.mxu0
  %v719 = vadd.f32 %v678, %v718
  %v720 = vpop.f32.mrf.mxu0
  %721 = vdwg.mxu0
  %v722 = vmax.f32 %v716, 0.0
  %v723 = vmax.f32 %v719, 0.0
  %v724 = vpack.c.bf16 %v723, %v722
  %v726 = vunpack.c.l.b16 %v724
  %v727 = vunpack.c.h.b16 %v724
  %v728 = vpack.c.b16 %v726, %v726
  %v729 = vpack.c.b16 %v727, %v727
  %vm732 = vcmask 257024
  %733 = vst.msk [vmem:[%s3] sm:$0xf] %vm732, %v728
  %734 = vst.msk [vmem:[%s3 + $0x4] sm:$0xf] %vm732, %v729
  // Predicated region
  $region14: #{_forward_impl.2} parent=0 // pred_check
    _
  $region15: #{_forward_impl.2} parent=0 // pred_check_branch
    %736 = sbr.rel (0) target = $region17
  $region16: #{_forward_impl.2} parent=0 // pred_region
    _
  $region17: #{_forward_impl.2} parent=0 // pred_fallthru
    _
  // Predicated region
  $region18: #{_forward_impl.2} parent=0 // pred_check
    _
  $region19: #{_forward_impl.2} parent=0 // pred_check_branch
    %738 = sbr.rel (0) target = $region21
  $region20: #{_forward_impl.2} parent=0 // pred_region
    _
  $region21: #{_forward_impl.2} parent=0 // pred_fallthru
    _

</llo_original>
